<compile_context>
chip_gen: v7x
topology: tpu7x:2x2x1
jax: 0.10.0
libtpu: 0.0.40
codegen_flags: <defaults>
</compile_context>

<pallas_src>
import functools

import jax
import jax.numpy as jnp
from jax.experimental import pallas as pl
from jax.experimental.pallas import tpu as pltpu

NEG_SLOPE = 0.01  # PyTorch nn.LeakyReLU default


def _leaky_relu(x):
    # Identical to LeakyReLU(0.01) for slope in (0,1); mul+max instead of cmp+mul+select.
    return jnp.maximum(x, NEG_SLOPE * x)


def _dot_exact_f32(a, b):
    # 6-pass exact-f32 MXU path (bit-level fp32 nn.Linear parity).
    return jnp.dot(a, b, preferred_element_type=jnp.float32,
                   precision=jax.lax.Precision.HIGHEST)


def _split_bf16(x):
    hi = x.astype(jnp.bfloat16)
    lo = (x - hi.astype(jnp.float32)).astype(jnp.bfloat16)
    return hi, lo


def _dot_bf16x3(a, b):
    # 3-pass bf16 matmul (lax.Precision.HIGH numerics, ~fp32 accuracy): halves MXU
    # issue vs HIGHEST.  Emulated manually because Mosaic's dot lowering only exposes
    # the 1-pass bf16 (DEFAULT) and 6-pass f32 (HIGHEST) contract precisions.
    a_hi, a_lo = _split_bf16(a)
    b_hi, b_lo = _split_bf16(b)
    acc = jnp.dot(a_hi, b_hi, preferred_element_type=jnp.float32)
    acc += jnp.dot(a_lo, b_hi, preferred_element_type=jnp.float32)
    acc += jnp.dot(a_hi, b_lo, preferred_element_type=jnp.float32)
    return acc


def mlp_classifier_kernel(x_ref, w1_ref, b1_ref, w2_ref, b2_ref,
                          wc1_ref, bc1_ref, wc2_ref, bc2_ref, out_ref, *, exact):
    """One batch tile: 4 lane-dense matmuls, no loops / concat / relayout."""
    dot = _dot_exact_f32 if exact else _dot_bf16x3
    x = x_ref[...]                                            # (tb, fold*W*D)
    h = _leaky_relu(dot(x, w1_ref[...]) + b1_ref[...])        # (tb, fold*W*H)
    ys = _leaky_relu(dot(h, w2_ref[...]) + b2_ref[...])       # (tb, fold*W*H) == concat
    c = _leaky_relu(dot(ys, wc1_ref[...]) + bc1_ref[...])     # (tb, fold*H)
    out_ref[...] = dot(c, wc2_ref[...]) + bc2_ref[...]        # (tb, fold*O)


def _auto_fold(window, d_in):
    """Batch rows folded per kernel row so the x tile is lane-dense (128-wide minor)."""
    wd = window * d_in
    if wd >= 128 or (128 % wd) != 0:
        return 1
    try:
        kind = jax.devices()[0].device_kind.lower()
    except Exception:
        return 1
    # 256-wide-MXU chips (v6e/v7x): fold makes x lane-dense and fills the MXU.
    # On 128-wide-MXU chips (<= v5e) it would double the accumulation passes of the
    # (WH, WH) encoder matmul, so keep WH = W*H there (perf-review v5e note).
    if ("v6" in kind) or ("v7" in kind):
        return min(128 // wd, 8)
    return 1


def prepare_params(params, window, fold=None):
    """One-time repack: shared per-window encoder weights -> block-diagonal form (kills
    the window loop / feature-axis concat), optionally folding `fold` consecutive batch
    rows per kernel row so every operand is lane-dense."""
    w1, b1 = params["w1"], params["b1"]          # (D, H), (1, H)
    w2, b2 = params["w2"], params["b2"]          # (H, H), (1, H)
    if fold is None:
        fold = _auto_fold(window, w1.shape[0])
    fold = max(1, int(fold))
    eye_enc = jnp.eye(fold * window, dtype=w1.dtype)
    eye_cls = jnp.eye(fold, dtype=w1.dtype)
    return dict(
        w1=jnp.kron(eye_enc, w1), b1=jnp.tile(b1, (1, fold * window)),   # (f*W*D, f*W*H)
        w2=jnp.kron(eye_enc, w2), b2=jnp.tile(b2, (1, fold * window)),   # (f*W*H, f*W*H)
        wc1=jnp.kron(eye_cls, params["wc1"]), bc1=jnp.tile(params["bc1"], (1, fold)),
        wc2=jnp.kron(eye_cls, params["wc2"]), bc2=jnp.tile(params["bc2"], (1, fold)),
        fold=fold,
    )


def mlp_classifier_forward(x, kparams, *, tb=1024, exact=False):
    """x: (B, W, D) float32; kparams from prepare_params(). Returns (B, O) float32."""
    B, W, D = x.shape
    fold = int(kparams.get("fold", 1))
    WDf = kparams["w1"].shape[0]          # fold * W * D
    WHf = kparams["w1"].shape[1]          # fold * W * H
    Hf = kparams["wc1"].shape[1]          # fold * H
    Of = kparams["wc2"].shape[1]          # fold * O
    O = Of // fold
    assert WDf == fold * W * D, (WDf, fold, W, D)

    # Fold `fold` consecutive batch rows into one lane-dense kernel row
    # (row-major reshape == concatenation of consecutive rows).
    rows = pl.cdiv(B, fold)
    if rows * fold != B:
        x = jnp.pad(x, ((0, rows * fold - B), (0, 0), (0, 0)))
    x2 = x.reshape(rows, WDf)
    # TODO(synk): produce x upstream already in (B//fold, fold*W*D) layout so this
    # reshape (an XLA relayout pass over HBM) disappears from the end-to-end path.

    # Batch tile: multiple of 8 sublanes, as large as requested (amortizes the ~0.35us
    # per-grid-step overhead; weights stay VMEM-resident), but capped at ceil(rows/2)
    # so multi-TensorCore chips (v7x) always have >=2 "parallel" steps to shard.
    tb = max(8, ((min(int(tb), rows) + 7) // 8) * 8)
    if rows > 8:
        tb = min(tb, ((pl.cdiv(rows, 2) + 7) // 8) * 8)
    nsteps = pl.cdiv(rows, tb)
    rows_p = nsteps * tb
    if rows_p != rows:
        # Only hit when B is not a multiple of 8*fold; size B accordingly in production
        # to avoid this extra HBM pass.
        x2 = jnp.pad(x2, ((0, rows_p - rows), (0, 0)))

    resident = lambda shape: pl.BlockSpec(shape, lambda i: (0, 0))   # VMEM-resident

    out = pl.pallas_call(
        functools.partial(mlp_classifier_kernel, exact=exact),
        grid=(nsteps,),
        in_specs=[
            pl.BlockSpec((tb, WDf), lambda i: (i, 0)),   # x tile streams over batch
            resident((WDf, WHf)), resident((1, WHf)),    # encoder layer 1 (block-diag)
            resident((WHf, WHf)), resident((1, WHf)),    # encoder layer 2 (block-diag)
            resident((WHf, Hf)), resident((1, Hf)),      # classifier layer 1
            resident((Hf, Of)), resident((1, Of)),       # classifier layer 2
        ],
        out_specs=pl.BlockSpec((tb, Of), lambda i: (i, 0)),
        out_shape=jax.ShapeDtypeStruct((rows_p, Of), jnp.float32),
        compiler_params=pltpu.CompilerParams(
            dimension_semantics=("parallel",),           # megacore sharding on v7x
            # vmem_limit_bytes only needed if tb is pushed past ~8K rows (v5e scoped
            # default is 16 MiB); at tb<=2048 the footprint is a few MiB.
        ),
    )(x2,
      kparams["w1"], kparams["b1"], kparams["w2"], kparams["b2"],
      kparams["wc1"], kparams["bc1"], kparams["wc2"], kparams["bc2"])

    if rows_p != rows:
        out = out[:rows]
    if fold != 1:
        out = out.reshape(rows * fold, O)   # un-fold: consecutive rows back to batch
    if rows * fold != B:
        out = out[:B]
    return out


def init_params(key, d_in, hidden, window, d_out):
    """Deterministic init mimicking torch.nn.Linear's U(-1/sqrt(fan_in), 1/sqrt(fan_in))."""
    def linear(k, fan_in, fan_out):
        kw, kb = jax.random.split(k)
        bound = 1.0 / jnp.sqrt(fan_in)
        w = jax.random.uniform(kw, (fan_in, fan_out), jnp.float32, -bound, bound)
        b = jax.random.uniform(kb, (1, fan_out), jnp.float32, -bound, bound)
        return w, b

    k1, k2, k3, k4 = jax.random.split(key, 4)
    w1, b1 = linear(k1, d_in, hidden)                # encoder layer 1
    w2, b2 = linear(k2, hidden, hidden)              # encoder layer 2
    wc1, bc1 = linear(k3, window * hidden, hidden)   # classifier layer 1 (join_shape = W*H)
    wc2, bc2 = linear(k4, hidden, d_out)             # classifier layer 2
    return dict(w1=w1, b1=b1, w2=w2, b2=b2,
                wc1=wc1, bc1=bc1, wc2=wc2, bc2=bc2)


def reference_forward(x, p):
    """Pure-JAX replica of the PyTorch module (per-window encoder + cat + classifier)."""
    dot = lambda a, b: jnp.dot(a, b, precision=jax.lax.Precision.HIGHEST)
    xt = jnp.transpose(x, (1, 0, 2))                 # (W, B, D)
    hs = []
    for w in range(xt.shape[0]):
        h = _leaky_relu(dot(xt[w], p["w1"]) + p["b1"])
        h = _leaky_relu(dot(h, p["w2"]) + p["b2"])
        hs.append(h)
    ys = jnp.concatenate(hs, axis=1)                 # (B, W*H)
    c = _leaky_relu(dot(ys, p["wc1"]) + p["bc1"])
    return dot(c, p["wc2"]) + p["bc2"]


if __name__ == "__main__":
    # MLPClassifier(input_shape=(window=4, 16), hidden_shape=32, output_shape=8), batch=32.
    B, W, D, H, O = 32, 4, 16, 32, 8

    key = jax.random.PRNGKey(0)
    kx, kp = jax.random.split(key)
    x = jax.random.normal(kx, (B, W, D), jnp.float32)
    params = init_params(kp, D, H, W, O)

    ref = reference_forward(x, params)

    # Exercise both weight packings (unfolded = v5e path, 2-row fold = v6e/v7x path)
    # and both precision modes on whatever chip the sandbox has; each run uses a
    # multi-step batch grid (grid=2 here) so the pipelined path is covered.
    for fold in (1, 2):
        kparams = prepare_params(params, W, fold=fold)
        for exact, tol in ((True, 1e-4), (False, 2e-3)):
            out = jax.block_until_ready(
                mlp_classifier_forward(x, kparams, tb=1024, exact=exact))
            assert out.shape == (B, O), out.shape
            assert jnp.allclose(out, ref, atol=tol, rtol=tol), (fold, exact)

    # Default configuration: auto fold for the local chip, bf16x3 matmuls, tb=1024.
    out = jax.block_until_ready(mlp_classifier_forward(x, prepare_params(params, W)))
    assert out.shape == (B, O), out.shape
    assert jnp.allclose(out, ref, atol=2e-3, rtol=2e-3), "mismatch vs reference"

    print("KERNEL_OK")
</pallas_src>

<mosaic_0001>
module attributes {stable_mosaic.version = 11 : i64} {
  func.func @mlp_classifier_kernel(%arg0: i32, %arg1: memref<16x64xf32, #tpu.memory_space<vmem>>, %arg2: memref<64x128xf32, #tpu.memory_space<vmem>>, %arg3: memref<1x128xf32, #tpu.memory_space<vmem>>, %arg4: memref<128x128xf32, #tpu.memory_space<vmem>>, %arg5: memref<1x128xf32, #tpu.memory_space<vmem>>, %arg6: memref<128x32xf32, #tpu.memory_space<vmem>>, %arg7: memref<1x32xf32, #tpu.memory_space<vmem>>, %arg8: memref<32x8xf32, #tpu.memory_space<vmem>>, %arg9: memref<1x8xf32, #tpu.memory_space<vmem>>, %arg10: memref<16x8xf32, #tpu.memory_space<vmem>>) attributes {dimension_semantics = [#tpu.dimension_semantics<parallel>], iteration_bounds = array<i64: 2>, scalar_prefetch = 0 : i64, scratch_operands = 0 : i64, tpu.core_type = #tpu.core_type<tc>, window_params = [{transform_indices = @transform_0, window_bounds = array<i64: 16, 64>}, {pipeline_mode = #tpu.pipeline_mode<synchronous>, transform_indices = @transform_1, window_bounds = array<i64: 64, 128>}, {pipeline_mode = #tpu.pipeline_mode<synchronous>, transform_indices = @transform_2, window_bounds = array<i64: 1, 128>}, {pipeline_mode = #tpu.pipeline_mode<synchronous>, transform_indices = @transform_3, window_bounds = array<i64: 128, 128>}, {pipeline_mode = #tpu.pipeline_mode<synchronous>, transform_indices = @transform_4, window_bounds = array<i64: 1, 128>}, {pipeline_mode = #tpu.pipeline_mode<synchronous>, transform_indices = @transform_5, window_bounds = array<i64: 128, 32>}, {pipeline_mode = #tpu.pipeline_mode<synchronous>, transform_indices = @transform_6, window_bounds = array<i64: 1, 32>}, {pipeline_mode = #tpu.pipeline_mode<synchronous>, transform_indices = @transform_7, window_bounds = array<i64: 32, 8>}, {pipeline_mode = #tpu.pipeline_mode<synchronous>, transform_indices = @transform_8, window_bounds = array<i64: 1, 8>}, {transform_indices = @transform_9, window_bounds = array<i64: 16, 8>}]} {
    %c0 = arith.constant 0 : index
    %c0_0 = arith.constant 0 : index
    %0 = vector.load %arg1[%c0, %c0_0] : memref<16x64xf32, #tpu.memory_space<vmem>>, vector<16x64xf32>
    %c0_1 = arith.constant 0 : index
    %c0_2 = arith.constant 0 : index
    %1 = vector.load %arg2[%c0_1, %c0_2] : memref<64x128xf32, #tpu.memory_space<vmem>>, vector<64x128xf32>
    %cst = arith.constant dense<0.000000e+00> : vector<16x128xf32>
    %2 = tpu.matmul %0, %1, %cst {dimension_numbers = #tpu.dot_dimension_numbers<[1], [0], [0], [1], [0, 0, 1, 1], [], []>, precision = #tpu.contract_precision<fp32>} : vector<16x64xf32>, vector<64x128xf32>, vector<16x128xf32> -> vector<16x128xf32>
    %c0_3 = arith.constant 0 : index
    %c0_4 = arith.constant 0 : index
    %3 = vector.load %arg3[%c0_3, %c0_4] : memref<1x128xf32, #tpu.memory_space<vmem>>, vector<1x128xf32>
    %4 = vector.broadcast %3 : vector<1x128xf32> to vector<16x128xf32>
    %5 = arith.addf %2, %4 : vector<16x128xf32>
    %cst_5 = arith.constant 0.00999999977 : f32
    %6 = vector.broadcast %cst_5 : f32 to vector<16x128xf32>
    %7 = arith.mulf %6, %5 : vector<16x128xf32>
    %8 = arith.maximumf %5, %7 : vector<16x128xf32>
    %c0_6 = arith.constant 0 : index
    %c0_7 = arith.constant 0 : index
    %9 = vector.load %arg4[%c0_6, %c0_7] : memref<128x128xf32, #tpu.memory_space<vmem>>, vector<128x128xf32>
    %cst_8 = arith.constant dense<0.000000e+00> : vector<16x128xf32>
    %10 = tpu.matmul %8, %9, %cst_8 {dimension_numbers = #tpu.dot_dimension_numbers<[1], [0], [0], [1], [0, 0, 1, 1], [], []>, precision = #tpu.contract_precision<fp32>} : vector<16x128xf32>, vector<128x128xf32>, vector<16x128xf32> -> vector<16x128xf32>
    %c0_9 = arith.constant 0 : index
    %c0_10 = arith.constant 0 : index
    %11 = vector.load %arg5[%c0_9, %c0_10] : memref<1x128xf32, #tpu.memory_space<vmem>>, vector<1x128xf32>
    %12 = vector.broadcast %11 : vector<1x128xf32> to vector<16x128xf32>
    %13 = arith.addf %10, %12 : vector<16x128xf32>
    %cst_11 = arith.constant 0.00999999977 : f32
    %14 = vector.broadcast %cst_11 : f32 to vector<16x128xf32>
    %15 = arith.mulf %14, %13 : vector<16x128xf32>
    %16 = arith.maximumf %13, %15 : vector<16x128xf32>
    %c0_12 = arith.constant 0 : index
    %c0_13 = arith.constant 0 : index
    %17 = vector.load %arg6[%c0_12, %c0_13] : memref<128x32xf32, #tpu.memory_space<vmem>>, vector<128x32xf32>
    %cst_14 = arith.constant dense<0.000000e+00> : vector<16x32xf32>
    %18 = tpu.matmul %16, %17, %cst_14 {dimension_numbers = #tpu.dot_dimension_numbers<[1], [0], [0], [1], [0, 0, 1, 1], [], []>, precision = #tpu.contract_precision<fp32>} : vector<16x128xf32>, vector<128x32xf32>, vector<16x32xf32> -> vector<16x32xf32>
    %c0_15 = arith.constant 0 : index
    %c0_16 = arith.constant 0 : index
    %19 = vector.load %arg7[%c0_15, %c0_16] : memref<1x32xf32, #tpu.memory_space<vmem>>, vector<1x32xf32>
    %20 = vector.broadcast %19 : vector<1x32xf32> to vector<16x32xf32>
    %21 = arith.addf %18, %20 : vector<16x32xf32>
    %cst_17 = arith.constant 0.00999999977 : f32
    %22 = vector.broadcast %cst_17 : f32 to vector<16x32xf32>
    %23 = arith.mulf %22, %21 : vector<16x32xf32>
    %24 = arith.maximumf %21, %23 : vector<16x32xf32>
    %c0_18 = arith.constant 0 : index
    %c0_19 = arith.constant 0 : index
    %25 = vector.load %arg8[%c0_18, %c0_19] : memref<32x8xf32, #tpu.memory_space<vmem>>, vector<32x8xf32>
    %cst_20 = arith.constant dense<0.000000e+00> : vector<16x8xf32>
    %26 = tpu.matmul %24, %25, %cst_20 {dimension_numbers = #tpu.dot_dimension_numbers<[1], [0], [0], [1], [0, 0, 1, 1], [], []>, precision = #tpu.contract_precision<fp32>} : vector<16x32xf32>, vector<32x8xf32>, vector<16x8xf32> -> vector<16x8xf32>
    %c0_21 = arith.constant 0 : index
    %c0_22 = arith.constant 0 : index
    %27 = vector.load %arg9[%c0_21, %c0_22] : memref<1x8xf32, #tpu.memory_space<vmem>>, vector<1x8xf32>
    %28 = vector.broadcast %27 : vector<1x8xf32> to vector<16x8xf32>
    %29 = arith.addf %26, %28 : vector<16x8xf32>
    %c0_23 = arith.constant 0 : index
    %c0_24 = arith.constant 0 : index
    %30 = vector.load %arg10[%c0_23, %c0_24] : memref<16x8xf32, #tpu.memory_space<vmem>>, vector<16x8xf32>
    tpu.vector_store %arg10[%c0_23, %c0_24], %29 {strides = array<i32>} : memref<16x8xf32, #tpu.memory_space<vmem>>, vector<16x8xf32>,
    return
  }
  func.func @transform_0(%arg0: i32) -> (i32, i32) {
    %c0_i32 = arith.constant 0 : i32
    %c0_i32_0 = arith.constant 0 : i32
    return %arg0, %c0_i32 : i32, i32
  }
  func.func @transform_1(%arg0: i32) -> (i32, i32) {
    %c0_i32 = arith.constant 0 : i32
    %c0_i32_0 = arith.constant 0 : i32
    %c0_i32_1 = arith.constant 0 : i32
    return %c0_i32, %c0_i32_0 : i32, i32
  }
  func.func @transform_2(%arg0: i32) -> (i32, i32) {
    %c0_i32 = arith.constant 0 : i32
    %c0_i32_0 = arith.constant 0 : i32
    %c0_i32_1 = arith.constant 0 : i32
    return %c0_i32, %c0_i32_0 : i32, i32
  }
  func.func @transform_3(%arg0: i32) -> (i32, i32) {
    %c0_i32 = arith.constant 0 : i32
    %c0_i32_0 = arith.constant 0 : i32
    %c0_i32_1 = arith.constant 0 : i32
    return %c0_i32, %c0_i32_0 : i32, i32
  }
  func.func @transform_4(%arg0: i32) -> (i32, i32) {
    %c0_i32 = arith.constant 0 : i32
    %c0_i32_0 = arith.constant 0 : i32
    %c0_i32_1 = arith.constant 0 : i32
    return %c0_i32, %c0_i32_0 : i32, i32
  }
  func.func @transform_5(%arg0: i32) -> (i32, i32) {
    %c0_i32 = arith.constant 0 : i32
    %c0_i32_0 = arith.constant 0 : i32
    %c0_i32_1 = arith.constant 0 : i32
    return %c0_i32, %c0_i32_0 : i32, i32
  }
  func.func @transform_6(%arg0: i32) -> (i32, i32) {
    %c0_i32 = arith.constant 0 : i32
    %c0_i32_0 = arith.constant 0 : i32
    %c0_i32_1 = arith.constant 0 : i32
    return %c0_i32, %c0_i32_0 : i32, i32
  }
  func.func @transform_7(%arg0: i32) -> (i32, i32) {
    %c0_i32 = arith.constant 0 : i32
    %c0_i32_0 = arith.constant 0 : i32
    %c0_i32_1 = arith.constant 0 : i32
    return %c0_i32, %c0_i32_0 : i32, i32
  }
  func.func @transform_8(%arg0: i32) -> (i32, i32) {
    %c0_i32 = arith.constant 0 : i32
    %c0_i32_0 = arith.constant 0 : i32
    %c0_i32_1 = arith.constant 0 : i32
    return %c0_i32, %c0_i32_0 : i32, i32
  }
  func.func @transform_9(%arg0: i32) -> (i32, i32) {
    %c0_i32 = arith.constant 0 : i32
    %c0_i32_0 = arith.constant 0 : i32
    return %arg0, %c0_i32 : i32, i32
  }
}

</mosaic_0001>

<llo_original>
// kernel: tpu_custom_call.1
$region0: #{tpu_custom_call.1}
  #allocation0 [shape = 'u32[]', space=smem, size = 0x4, offset = 0x4, fixed_abs, tag = 'smem constant byte address 0x4 - core index']
  #allocation1 [shape = 'u32[144,128]{1,0:T(1,128)}', space=vmem, size = 0x12000, scoped, tag = 'internal scratch']
  %s0 = inlined_call_operand.hbm [shape: f32[32,64], index: 0, kind: input, shape index: {}]
  %s1 = inlined_call_operand.vmem [shape: f32[64,128], index: 1, kind: input, shape index: {}]
  %s2 = inlined_call_operand.vmem [shape: f32[1,128], index: 2, kind: input, shape index: {}]
  %s3 = inlined_call_operand.vmem [shape: f32[128,128], index: 3, kind: input, shape index: {}]
  %s4 = inlined_call_operand.vmem [shape: f32[1,128], index: 4, kind: input, shape index: {}]
  %s5 = inlined_call_operand.vmem [shape: f32[128,32], index: 5, kind: input, shape index: {}]
  %s6 = inlined_call_operand.vmem [shape: f32[1,32], index: 6, kind: input, shape index: {}]
  %s7 = inlined_call_operand.vmem [shape: f32[32,8], index: 7, kind: input, shape index: {}]
  %s8 = inlined_call_operand.vmem [shape: f32[1,8], index: 8, kind: input, shape index: {}]
  %s9 = inlined_call_operand.vmem [shape: f32[32,8], index: 9, kind: output, shape index: {}]
  %s10 = sld [smem:[#allocation0]]
  $region73: #{tpu_custom_call.1} parent=0
    _
  %s12 = ssub.s32 1, %s10
  %s13 = scalar_select 0, %s12, %s10
  $region1: #{tpu_custom_call.1} parent=0
    #allocation2 [shape = 'u8[16384]{0}', space=vmem, size = 0x4000, scoped, tag = 'input window, operand 0']
    #allocation3 [shape = 's32[2]{0}', space=sflag, size = 0x8, scoped, tag = 'scoped memory for tpu_custom_call.1']
    %14 = vsyncpa [#allocation3], 0
    %s15 = scalar_lea.sflag [#allocation3], 1
    %16 = vsyncpa %s15, 0
    loop: start=0, step=1, limit=4
    $region2: #{tpu_custom_call.1} parent=1 // loop_pre_header
      _
    $region3: #{tpu_custom_call.1} parent=1 // loop_header
      %s18 = sphi 0, %s22
      %p19 = scmp.ge.s32.totalorder %s18, 4
      %s28 = sphi 0, %s30
      %s31 = sphi 0, %s28
      %s32 = sphi 0, %s31
      %s48 = sphi 0, %s32
      %s52 = sphi 0, %s52
      %s54 = sphi 0, %s52
      %s55 = sphi 0, %s54
      %s69 = sphi 0, %s55
      %s73 = sphi 0, %s73
      %s75 = sphi 0, %s73
      %s76 = sphi 0, %s75
      %s90 = sphi 0, %s76
      %s94 = sphi 0, %s94
      %s96 = sphi 0, %s94
      %s97 = sphi 0, %s96
      %s111 = sphi 0, %s97
      %s115 = sphi 0, %s115
      %s117 = sphi 0, %s115
      %s118 = sphi 0, %s117
      %s132 = sphi 0, %s118
      %s136 = sphi 0, %s136
      %s138 = sphi 0, %s136
      %s139 = sphi 0, %s138
      %s153 = sphi 0, %s139
      %s157 = sphi 0, %s157
      %s159 = sphi 0, %s157
      %s160 = sphi 0, %s159
      %s174 = sphi 0, %s160
      %s178 = sphi 0, %s178
      %s180 = sphi 0, %s178
      %s181 = sphi 0, %s180
      %s195 = sphi 0, %s181
      %s199 = sphi 0, %s199
      %s201 = sphi 0, %s199
      %s202 = sphi 0, %s201
      %s216 = sphi 0, %s202
      %s222 = sphi 0, %s224
      %s225 = sphi 0, %s222
      %s226 = sphi 0, %s225
      %s242 = sphi 0, %s226
    $region4: #{tpu_custom_call.1} parent=1 // loop_header_branch
      %21 = sbr.rel (%p19) target = $region8
    $region5: #{tpu_custom_call.1} parent=1 // loop_body
      %s23 = ssub.s32 %s18, 1
      %s24 = ssub.s32 %s18, 2
      %s25 = sadd.s32 %s18, 1
      %s26 = ssub.s32 %s18, %s25
      %p27 = scmp.eq.s32.totalorder %s26, 0
      %s29 = sadd.s32 %s28, 1
      %s30 = scalar_select %p27, %s28, %s29
      %p33 = pneg %p27
      %p34 = scmp.eq.s32.totalorder %s18, 1
      %p35 = por %p33, %p34
      %p36 = scmp.ne.s32.totalorder %s28, %s31
      %p37 = scmp.eq.s32.totalorder %s18, 0
      %p38 = por %p36, %p37
      %p39 = scmp.ne.s32.totalorder %s28, %s31
      %p40 = scmp.eq.s32.totalorder %s23, 1
      %p41 = por %p39, %p40
      %p42 = scmp.ne.s32.totalorder %s31, %s32
      %p43 = scmp.eq.s32.totalorder %s23, 0
      %p44 = por %p42, %p43
      %p45 = scmp.ne.s32.totalorder %s31, %s32
      %p46 = scmp.eq.s32.totalorder %s24, 1
      %p47 = por %p45, %p46
      %p49 = scmp.ne.s32.totalorder %s32, %s48
      %p50 = scmp.eq.s32.totalorder %s24, 0
      %p51 = por %p49, %p50
      %s53 = sadd.s32 %s52, 1
      %p56 = scmp.eq.s32.totalorder %s18, 1
      %p57 = scmp.ne.s32.totalorder %s52, %s54
      %p58 = scmp.eq.s32.totalorder %s18, 0
      %p59 = por %p57, %p58
      %p60 = scmp.ne.s32.totalorder %s52, %s54
      %p61 = scmp.eq.s32.totalorder %s23, 1
      %p62 = por %p60, %p61
      %p63 = scmp.ne.s32.totalorder %s54, %s55
      %p64 = scmp.eq.s32.totalorder %s23, 0
      %p65 = por %p63, %p64
      %p66 = scmp.ne.s32.totalorder %s54, %s55
      %p67 = scmp.eq.s32.totalorder %s24, 1
      %p68 = por %p66, %p67
      %p70 = scmp.ne.s32.totalorder %s55, %s69
      %p71 = scmp.eq.s32.totalorder %s24, 0
      %p72 = por %p70, %p71
      %s74 = sadd.s32 %s73, 1
      %p77 = scmp.eq.s32.totalorder %s18, 1
      %p78 = scmp.ne.s32.totalorder %s73, %s75
      %p79 = scmp.eq.s32.totalorder %s18, 0
      %p80 = por %p78, %p79
      %p81 = scmp.ne.s32.totalorder %s73, %s75
      %p82 = scmp.eq.s32.totalorder %s23, 1
      %p83 = por %p81, %p82
      %p84 = scmp.ne.s32.totalorder %s75, %s76
      %p85 = scmp.eq.s32.totalorder %s23, 0
      %p86 = por %p84, %p85
      %p87 = scmp.ne.s32.totalorder %s75, %s76
      %p88 = scmp.eq.s32.totalorder %s24, 1
      %p89 = por %p87, %p88
      %p91 = scmp.ne.s32.totalorder %s76, %s90
      %p92 = scmp.eq.s32.totalorder %s24, 0
      %p93 = por %p91, %p92
      %s95 = sadd.s32 %s94, 1
      %p98 = scmp.eq.s32.totalorder %s18, 1
      %p99 = scmp.ne.s32.totalorder %s94, %s96
      %p100 = scmp.eq.s32.totalorder %s18, 0
      %p101 = por %p99, %p100
      %p102 = scmp.ne.s32.totalorder %s94, %s96
      %p103 = scmp.eq.s32.totalorder %s23, 1
      %p104 = por %p102, %p103
      %p105 = scmp.ne.s32.totalorder %s96, %s97
      %p106 = scmp.eq.s32.totalorder %s23, 0
      %p107 = por %p105, %p106
      %p108 = scmp.ne.s32.totalorder %s96, %s97
      %p109 = scmp.eq.s32.totalorder %s24, 1
      %p110 = por %p108, %p109
      %p112 = scmp.ne.s32.totalorder %s97, %s111
      %p113 = scmp.eq.s32.totalorder %s24, 0
      %p114 = por %p112, %p113
      %s116 = sadd.s32 %s115, 1
      %p119 = scmp.eq.s32.totalorder %s18, 1
      %p120 = scmp.ne.s32.totalorder %s115, %s117
      %p121 = scmp.eq.s32.totalorder %s18, 0
      %p122 = por %p120, %p121
      %p123 = scmp.ne.s32.totalorder %s115, %s117
      %p124 = scmp.eq.s32.totalorder %s23, 1
      %p125 = por %p123, %p124
      %p126 = scmp.ne.s32.totalorder %s117, %s118
      %p127 = scmp.eq.s32.totalorder %s23, 0
      %p128 = por %p126, %p127
      %p129 = scmp.ne.s32.totalorder %s117, %s118
      %p130 = scmp.eq.s32.totalorder %s24, 1
      %p131 = por %p129, %p130
      %p133 = scmp.ne.s32.totalorder %s118, %s132
      %p134 = scmp.eq.s32.totalorder %s24, 0
      %p135 = por %p133, %p134
      %s137 = sadd.s32 %s136, 1
      %p140 = scmp.eq.s32.totalorder %s18, 1
      %p141 = scmp.ne.s32.totalorder %s136, %s138
      %p142 = scmp.eq.s32.totalorder %s18, 0
      %p143 = por %p141, %p142
      %p144 = scmp.ne.s32.totalorder %s136, %s138
      %p145 = scmp.eq.s32.totalorder %s23, 1
      %p146 = por %p144, %p145
      %p147 = scmp.ne.s32.totalorder %s138, %s139
      %p148 = scmp.eq.s32.totalorder %s23, 0
      %p149 = por %p147, %p148
      %p150 = scmp.ne.s32.totalorder %s138, %s139
      %p151 = scmp.eq.s32.totalorder %s24, 1
      %p152 = por %p150, %p151
      %p154 = scmp.ne.s32.totalorder %s139, %s153
      %p155 = scmp.eq.s32.totalorder %s24, 0
      %p156 = por %p154, %p155
      %s158 = sadd.s32 %s157, 1
      %p161 = scmp.eq.s32.totalorder %s18, 1
      %p162 = scmp.ne.s32.totalorder %s157, %s159
      %p163 = scmp.eq.s32.totalorder %s18, 0
      %p164 = por %p162, %p163
      %p165 = scmp.ne.s32.totalorder %s157, %s159
      %p166 = scmp.eq.s32.totalorder %s23, 1
      %p167 = por %p165, %p166
      %p168 = scmp.ne.s32.totalorder %s159, %s160
      %p169 = scmp.eq.s32.totalorder %s23, 0
      %p170 = por %p168, %p169
      %p171 = scmp.ne.s32.totalorder %s159, %s160
      %p172 = scmp.eq.s32.totalorder %s24, 1
      %p173 = por %p171, %p172
      %p175 = scmp.ne.s32.totalorder %s160, %s174
      %p176 = scmp.eq.s32.totalorder %s24, 0
      %p177 = por %p175, %p176
      %s179 = sadd.s32 %s178, 1
      %p182 = scmp.eq.s32.totalorder %s18, 1
      %p183 = scmp.ne.s32.totalorder %s178, %s180
      %p184 = scmp.eq.s32.totalorder %s18, 0
      %p185 = por %p183, %p184
      %p186 = scmp.ne.s32.totalorder %s178, %s180
      %p187 = scmp.eq.s32.totalorder %s23, 1
      %p188 = por %p186, %p187
      %p189 = scmp.ne.s32.totalorder %s180, %s181
      %p190 = scmp.eq.s32.totalorder %s23, 0
      %p191 = por %p189, %p190
      %p192 = scmp.ne.s32.totalorder %s180, %s181
      %p193 = scmp.eq.s32.totalorder %s24, 1
      %p194 = por %p192, %p193
      %p196 = scmp.ne.s32.totalorder %s181, %s195
      %p197 = scmp.eq.s32.totalorder %s24, 0
      %p198 = por %p196, %p197
      %s200 = sadd.s32 %s199, 1
      %p203 = scmp.eq.s32.totalorder %s18, 1
      %p204 = scmp.ne.s32.totalorder %s199, %s201
      %p205 = scmp.eq.s32.totalorder %s18, 0
      %p206 = por %p204, %p205
      %p207 = scmp.ne.s32.totalorder %s199, %s201
      %p208 = scmp.eq.s32.totalorder %s23, 1
      %p209 = por %p207, %p208
      %p210 = scmp.ne.s32.totalorder %s201, %s202
      %p211 = scmp.eq.s32.totalorder %s23, 0
      %p212 = por %p210, %p211
      %p213 = scmp.ne.s32.totalorder %s201, %s202
      %p214 = scmp.eq.s32.totalorder %s24, 1
      %p215 = por %p213, %p214
      %p217 = scmp.ne.s32.totalorder %s202, %s216
      %p218 = scmp.eq.s32.totalorder %s24, 0
      %p219 = por %p217, %p218
      %s220 = ssub.s32 %s18, %s25
      %p221 = scmp.eq.s32.totalorder %s220, 0
      %s223 = sadd.s32 %s222, 1
      %s224 = scalar_select %p221, %s222, %s223
      %p227 = pneg %p221
      %p228 = scmp.eq.s32.totalorder %s18, 1
      %p229 = por %p227, %p228
      %p230 = scmp.ne.s32.totalorder %s222, %s225
      %p231 = scmp.eq.s32.totalorder %s18, 0
      %p232 = por %p230, %p231
      %p233 = scmp.ne.s32.totalorder %s222, %s225
      %p234 = scmp.eq.s32.totalorder %s23, 1
      %p235 = por %p233, %p234
      %p236 = scmp.ne.s32.totalorder %s225, %s226
      %p237 = scmp.eq.s32.totalorder %s23, 0
      %p238 = por %p236, %p237
      %p239 = scmp.ne.s32.totalorder %s225, %s226
      %p240 = scmp.eq.s32.totalorder %s24, 1
      %p241 = por %p239, %p240
      %p243 = scmp.ne.s32.totalorder %s226, %s242
      %p244 = scmp.eq.s32.totalorder %s24, 0
      %p245 = por %p243, %p244
      %p246 = scmp.le.s32.totalorder 1, %s18
      %p247 = scmp.lt.s32.totalorder %s18, 3
      %p248 = pnand %p246, %p247
      %p249 = pneg %p248
      // Predicated region
      $region9: #{tpu_custom_call.1} parent=5 // pred_check
        _
      $region10: #{tpu_custom_call.1} parent=5 // pred_check_branch
        %251 = sbr.rel (%p248) target = $region12
      $region11: #{tpu_custom_call.1} parent=5 // pred_region
        %s252 = ssub.s32 %s18, 1
        // Predicated region
        $region13: #{tpu_custom_call.1} parent=11 // pred_check
          %p253 = pneg %p65
        $region14: #{tpu_custom_call.1} parent=11 // pred_check_branch
          %255 = sbr.rel (%p253) target = $region16
        $region15: #{tpu_custom_call.1} parent=11 // pred_region
          _
        $region16: #{tpu_custom_call.1} parent=11 // pred_fallthru
          _
        // Predicated region
        $region17: #{tpu_custom_call.1} parent=11 // pred_check
          %p256 = pneg %p86
        $region18: #{tpu_custom_call.1} parent=11 // pred_check_branch
          %258 = sbr.rel (%p256) target = $region20
        $region19: #{tpu_custom_call.1} parent=11 // pred_region
          _
        $region20: #{tpu_custom_call.1} parent=11 // pred_fallthru
          _
        // Predicated region
        $region21: #{tpu_custom_call.1} parent=11 // pred_check
          %p259 = pneg %p107
        $region22: #{tpu_custom_call.1} parent=11 // pred_check_branch
          %261 = sbr.rel (%p259) target = $region24
        $region23: #{tpu_custom_call.1} parent=11 // pred_region
          _
        $region24: #{tpu_custom_call.1} parent=11 // pred_fallthru
          _
        // Predicated region
        $region25: #{tpu_custom_call.1} parent=11 // pred_check
          %p262 = pneg %p128
        $region26: #{tpu_custom_call.1} parent=11 // pred_check_branch
          %264 = sbr.rel (%p262) target = $region28
        $region27: #{tpu_custom_call.1} parent=11 // pred_region
          _
        $region28: #{tpu_custom_call.1} parent=11 // pred_fallthru
          _
        // Predicated region
        $region29: #{tpu_custom_call.1} parent=11 // pred_check
          %p265 = pneg %p149
        $region30: #{tpu_custom_call.1} parent=11 // pred_check_branch
          %267 = sbr.rel (%p265) target = $region32
        $region31: #{tpu_custom_call.1} parent=11 // pred_region
          _
        $region32: #{tpu_custom_call.1} parent=11 // pred_fallthru
          _
        // Predicated region
        $region33: #{tpu_custom_call.1} parent=11 // pred_check
          %p268 = pneg %p170
        $region34: #{tpu_custom_call.1} parent=11 // pred_check_branch
          %270 = sbr.rel (%p268) target = $region36
        $region35: #{tpu_custom_call.1} parent=11 // pred_region
          _
        $region36: #{tpu_custom_call.1} parent=11 // pred_fallthru
          _
        // Predicated region
        $region37: #{tpu_custom_call.1} parent=11 // pred_check
          %p271 = pneg %p191
        $region38: #{tpu_custom_call.1} parent=11 // pred_check_branch
          %273 = sbr.rel (%p271) target = $region40
        $region39: #{tpu_custom_call.1} parent=11 // pred_region
          _
        $region40: #{tpu_custom_call.1} parent=11 // pred_fallthru
          _
        // Predicated region
        $region41: #{tpu_custom_call.1} parent=11 // pred_check
          %p274 = pneg %p212
        $region42: #{tpu_custom_call.1} parent=11 // pred_check_branch
          %276 = sbr.rel (%p274) target = $region44
        $region43: #{tpu_custom_call.1} parent=11 // pred_region
          _
        $region44: #{tpu_custom_call.1} parent=11 // pred_fallthru
          _
      $region12: #{tpu_custom_call.1} parent=5 // pred_fallthru
        _
      %p277 = scmp.lt.s32.totalorder %s18, 2
      // Predicated region
      $region45: #{tpu_custom_call.1} parent=5 // pred_check
        %p278 = pneg %p277
      $region46: #{tpu_custom_call.1} parent=5 // pred_check_branch
        %280 = sbr.rel (%p278) target = $region48
      $region47: #{tpu_custom_call.1} parent=5 // pred_region
        // Predicated region
        $region49: #{tpu_custom_call.1} parent=47 // pred_check
          %p281 = pneg %p38
        $region50: #{tpu_custom_call.1} parent=47 // pred_check_branch
          %283 = sbr.rel (%p281) target = $region52
        $region51: #{tpu_custom_call.1} parent=47 // pred_region
          %s284 = sand.u32 %s28, 1
          %s285 = scalar_lea.sflag [#allocation3], %s284
          %s286 = sand.u32 %s28, 1
          %s287 = smul.addr %s286, 16
          %s288 = scalar_lea.vmem [#allocation2], %s287
          %s289 = smul.u32 2, %s18
          %s291 = ssub.s32 256, 256
          %292 = vsyncadd %s285, %s291
          %s293 = smul.addr %s289, 128
          %s294 = scalar_lea.hbm %s0, %s293
          %s295 = sshll.u32 %s288, 4
          %s296 = int_to_ptr.vmem [resolvable:$true] %s295
          %301 = dma.hbm_to_vmem [thread:$0]  %s294, 256, %s296, %s285, 128, 128, 8
        $region52: #{tpu_custom_call.1} parent=47 // pred_fallthru
          _
      $region48: #{tpu_custom_call.1} parent=5 // pred_fallthru
        _
      %p302 = scmp.le.s32.totalorder 1, %s18
      %p303 = scmp.lt.s32.totalorder %s18, 3
      %p304 = pnand %p302, %p303
      %p305 = pneg %p304
      // Predicated region
      $region53: #{tpu_custom_call.1} parent=5 // pred_check
        _
      $region54: #{tpu_custom_call.1} parent=5 // pred_check_branch
        %307 = sbr.rel (%p304) target = $region56
      $region55: #{tpu_custom_call.1} parent=5 // pred_region
        %s308 = ssub.s32 %s18, 1
        %s309 = sand.u32 %s31, 1
        %s310 = scalar_lea.sflag [#allocation3], %s309
        %s311 = sand.u32 %s31, 1
        %s312 = smul.addr %s311, 16
        %s313 = scalar_lea.vmem [#allocation2], %s312
        // Predicated region
        $region57: #{tpu_custom_call.1} parent=55 // pred_check
          %p314 = pneg %p44
        $region58: #{tpu_custom_call.1} parent=55 // pred_check_branch
          %316 = sbr.rel (%p314) target = $region60
        $region59: #{tpu_custom_call.1} parent=55 // pred_region
          %317 = dma.done %s310, 256
        $region60: #{tpu_custom_call.1} parent=55 // pred_fallthru
          _
        %s318 = sand.u32 %s31, 1
        %s319 = scalar_lea.sflag [#allocation3], %s318
        %s320 = sand.u32 %s31, 1
        %s321 = smul.addr %s320, 16
        %s322 = scalar_lea.vmem [#allocation2], %s321
        %p323 = pneg %p44
        %p324 = pneg %p41
        %p325 = pneg %p65
        %p326 = pneg %p62
        %p327 = pneg %p86
        %p328 = pneg %p83
        %p329 = pneg %p107
        %p330 = pneg %p104
        %p331 = pneg %p128
        %p332 = pneg %p125
        %p333 = pneg %p149
        %p334 = pneg %p146
        %p335 = pneg %p170
        %p336 = pneg %p167
        %p337 = pneg %p191
        %p338 = pneg %p188
        %p339 = pneg %p212
        %p340 = pneg %p209
        %p341 = pneg %p238
        %p342 = pneg %p235
        %s343 = smul.u32 2, %s23
        %p344 = scmp.lt.s32.totalorder %s343, 3
        %s345 = scalar_select %p344, %s343, 3
        %s346 = smul.addr %s345, 8
        %s347 = scalar_lea.vmem %s9, %s346
        %s348 = smul.u32 2, %s23
        %s349 = smul.u32 2, %s23
        %p350 = scmp.lt.s32.totalorder %s349, 3
        %s351 = scalar_select %p350, %s349, 3
        %s352 = smul.addr %s351, 8
        %s353 = scalar_lea.vmem %s9, %s352
        %s354 = smul.u32 2, %s23
        %v355 = vld [vmem:[%s313] sm:$0xff]
        %v356 = vld [vmem:[%s313 + $0x8] sm:$0xff]
        %v357 = vld [vmem:[%s1] sm:$0xff]
        %v358 = vld [vmem:[%s1 + $0x8] sm:$0xff]
        %v359 = vld [vmem:[%s1 + $0x10] sm:$0xff]
        %v360 = vld [vmem:[%s1 + $0x18] sm:$0xff]
        %v361 = vld [vmem:[%s1 + $0x20] sm:$0xff]
        %v362 = vld [vmem:[%s1 + $0x28] sm:$0xff]
        %v363 = vld [vmem:[%s1 + $0x30] sm:$0xff]
        %v364 = vld [vmem:[%s1 + $0x38] sm:$0xff]
        %v365 = vld [vmem:[%s2] sm:$0x1]
        %v367 = vlaneseq
        %v368 = vshrl.u32 %v367, 7
        %v369 = vsub.s32 0, %v368
        %v370 = vrot.slane %v365, %v369
        %vm372 = vcmask 523264
        %v374 = vsel %vm372, %v355, 0
        %v377 = vsel %vm372, %v356, 0
        %379 = vmatprep.subr.mxu0 0.0
        %v380 = vand.u32 %v357, 4294901760
        %381 = vmatpush1.msra.mxu0 %v380
        %382 = vmatprep.subr.mxu0 0.0
        %v383 = vand.u32 %v358, 4294901760
        %384 = vmatpush1.msra.mxu0 %v383
        %385 = vmatprep.subr.mxu0 0.0
        %v386 = vand.u32 %v359, 4294901760
        %387 = vmatpush1.msra.mxu0 %v386
        %388 = vmatprep.subr.mxu0 0.0
        %v389 = vand.u32 %v360, 4294901760
        %390 = vmatpush1.msra.mxu0 %v389
        %391 = vmatprep.subr.mxu0 0.0
        %v392 = vand.u32 %v361, 4294901760
        %393 = vmatpush1.msra.mxu0 %v392
        %394 = vmatprep.subr.mxu0 0.0
        %v395 = vand.u32 %v362, 4294901760
        %396 = vmatpush1.msra.mxu0 %v395
        %397 = vmatprep.subr.mxu0 0.0
        %v398 = vand.u32 %v363, 4294901760
        %399 = vmatpush1.msra.mxu0 %v398
        %400 = vmatprep.subr.mxu0 0.0
        %v401 = vand.u32 %v364, 4294901760
        %402 = vmatpush1.msra.mxu0 %v401
        %403 = vmatprep.subr.mxu0 0.0
        %404 = vmatpush1.msra.mxu0 0.0
        %405 = vmatprep.subr.mxu0 0.0
        %406 = vmatpush1.msra.mxu0 0.0
        %407 = vmatprep.subr.mxu0 0.0
        %408 = vmatpush1.msra.mxu0 0.0
        %409 = vmatprep.subr.mxu0 0.0
        %410 = vmatpush1.msra.mxu0 0.0
        %411 = vmatprep.subr.mxu0 0.0
        %412 = vmatpush1.msra.mxu0 0.0
        %413 = vmatprep.subr.mxu0 0.0
        %414 = vmatpush1.msra.mxu0 0.0
        %415 = vmatprep.subr.mxu0 0.0
        %416 = vmatpush1.msra.mxu0 0.0
        %417 = vmatprep.subr.mxu0 0.0
        %418 = vmatpush1.msra.mxu0 0.0
        %419 = vmatprep.subr.mxu0 0.0
        %420 = vmatpush1.msra.mxu0 0.0
        %421 = vmatprep.subr.mxu0 0.0
        %422 = vmatpush1.msra.mxu0 0.0
        %423 = vmatprep.subr.mxu0 0.0
        %424 = vmatpush1.msra.mxu0 0.0
        %425 = vmatprep.subr.mxu0 0.0
        %426 = vmatpush1.msra.mxu0 0.0
        %427 = vmatprep.subr.mxu0 0.0
        %428 = vmatpush1.msra.mxu0 0.0
        %429 = vmatprep.subr.mxu0 0.0
        %430 = vmatpush1.msra.mxu0 0.0
        %431 = vmatprep.subr.mxu0 0.0
        %432 = vmatpush1.msra.mxu0 0.0
        %433 = vmatprep.subr.mxu0 0.0
        %434 = vmatpush1.msra.mxu0 0.0
        %435 = vmatprep.subr.mxu0 0.0
        %436 = vmatpush1.msra.mxu0 0.0
        %437 = vmatprep.subr.mxu0 0.0
        %438 = vmatpush1.msra.mxu0 0.0
        %439 = vmatprep.subr.mxu0 0.0
        %440 = vmatpush1.msra.mxu0 0.0
        %441 = vmatprep.subr.mxu0 0.0
        %442 = vmatpush1.msra.mxu0 0.0
        %443 = vmatprep.subr.mxu0 0.0
        %444 = vmatpush1.msra.mxu0 0.0
        %445 = vmatprep.subr.mxu0 0.0
        %446 = vmatpush1.msra.mxu0 0.0
        %447 = vmatprep.subr.mxu0 0.0
        %448 = vmatpush1.msra.mxu0 0.0
        %449 = vmatprep.subr.mxu0 0.0
        %450 = vmatpush1.msra.mxu0 0.0
        %451 = vmatprep.mubr.f32.mxu0 0.0
        %v452 = vand.u32 %v374, 4294901760
        %v453 = vsub.f32 %v374, %v452
        %v454 = vand.u32 %v453, 4294901760
        %v455 = vsub.f32 %v453, %v454
        %v456 = vand.u32 %v455, 4294901760
        %457 = vmatmul.mubr.f32.gmra.mrb[0].mxu0 %v456
        %v458 = vpop.f32.mrb[0].mxu0
        %v459 = vadd.f32 %v370, %v458
        %v460 = vpop.f32.mrb[0].mxu0
        %461 = vmatprep.mubr.f32.mxu0 0.0
        %v462 = vand.u32 %v377, 4294901760
        %v463 = vsub.f32 %v377, %v462
        %v464 = vand.u32 %v463, 4294901760
        %v465 = vsub.f32 %v463, %v464
        %v466 = vand.u32 %v465, 4294901760
        %467 = vmatmul.mubr.f32.gmra.mrb[0].mxu0 %v466
        %v468 = vpop.f32.mrb[0].mxu0
        %v469 = vadd.f32 %v370, %v468
        %v470 = vpop.f32.mrb[0].mxu0
        %471 = vdwg.mxu0
        %472 = vmatprep.subr.mxu0 0.0
        %v473 = vand.u32 %v357, 4294901760
        %v474 = vsub.f32 %v357, %v473
        %v475 = vand.u32 %v474, 4294901760
        %v476 = vsub.f32 %v474, %v475
        %v477 = vand.u32 %v476, 4294901760
        %478 = vmatpush1.msra.mxu0 %v477
        %479 = vmatprep.subr.mxu0 0.0
        %v480 = vand.u32 %v358, 4294901760
        %v481 = vsub.f32 %v358, %v480
        %v482 = vand.u32 %v481, 4294901760
        %v483 = vsub.f32 %v481, %v482
        %v484 = vand.u32 %v483, 4294901760
        %485 = vmatpush1.msra.mxu0 %v484
        %486 = vmatprep.subr.mxu0 0.0
        %v487 = vand.u32 %v359, 4294901760
        %v488 = vsub.f32 %v359, %v487
        %v489 = vand.u32 %v488, 4294901760
        %v490 = vsub.f32 %v488, %v489
        %v491 = vand.u32 %v490, 4294901760
        %492 = vmatpush1.msra.mxu0 %v491
        %493 = vmatprep.subr.mxu0 0.0
        %v494 = vand.u32 %v360, 4294901760
        %v495 = vsub.f32 %v360, %v494
        %v496 = vand.u32 %v495, 4294901760
        %v497 = vsub.f32 %v495, %v496
        %v498 = vand.u32 %v497, 4294901760
        %499 = vmatpush1.msra.mxu0 %v498
        %500 = vmatprep.subr.mxu0 0.0
        %v501 = vand.u32 %v361, 4294901760
        %v502 = vsub.f32 %v361, %v501
        %v503 = vand.u32 %v502, 4294901760
        %v504 = vsub.f32 %v502, %v503
        %v505 = vand.u32 %v504, 4294901760
        %506 = vmatpush1.msra.mxu0 %v505
        %507 = vmatprep.subr.mxu0 0.0
        %v508 = vand.u32 %v362, 4294901760
        %v509 = vsub.f32 %v362, %v508
        %v510 = vand.u32 %v509, 4294901760
        %v511 = vsub.f32 %v509, %v510
        %v512 = vand.u32 %v511, 4294901760
        %513 = vmatpush1.msra.mxu0 %v512
        %514 = vmatprep.subr.mxu0 0.0
        %v515 = vand.u32 %v363, 4294901760
        %v516 = vsub.f32 %v363, %v515
        %v517 = vand.u32 %v516, 4294901760
        %v518 = vsub.f32 %v516, %v517
        %v519 = vand.u32 %v518, 4294901760
        %520 = vmatpush1.msra.mxu0 %v519
        %521 = vmatprep.subr.mxu0 0.0
        %v522 = vand.u32 %v364, 4294901760
        %v523 = vsub.f32 %v364, %v522
        %v524 = vand.u32 %v523, 4294901760
        %v525 = vsub.f32 %v523, %v524
        %v526 = vand.u32 %v525, 4294901760
        %527 = vmatpush1.msra.mxu0 %v526
        %528 = vmatprep.subr.mxu0 0.0
        %529 = vmatpush1.msra.mxu0 0.0
        %530 = vmatprep.subr.mxu0 0.0
        %531 = vmatpush1.msra.mxu0 0.0
        %532 = vmatprep.subr.mxu0 0.0
        %533 = vmatpush1.msra.mxu0 0.0
        %534 = vmatprep.subr.mxu0 0.0
        %535 = vmatpush1.msra.mxu0 0.0
        %536 = vmatprep.subr.mxu0 0.0
        %537 = vmatpush1.msra.mxu0 0.0
        %538 = vmatprep.subr.mxu0 0.0
        %539 = vmatpush1.msra.mxu0 0.0
        %540 = vmatprep.subr.mxu0 0.0
        %541 = vmatpush1.msra.mxu0 0.0
        %542 = vmatprep.subr.mxu0 0.0
        %543 = vmatpush1.msra.mxu0 0.0
        %544 = vmatprep.subr.mxu0 0.0
        %545 = vmatpush1.msra.mxu0 0.0
        %546 = vmatprep.subr.mxu0 0.0
        %547 = vmatpush1.msra.mxu0 0.0
        %548 = vmatprep.subr.mxu0 0.0
        %549 = vmatpush1.msra.mxu0 0.0
        %550 = vmatprep.subr.mxu0 0.0
        %551 = vmatpush1.msra.mxu0 0.0
        %552 = vmatprep.subr.mxu0 0.0
        %553 = vmatpush1.msra.mxu0 0.0
        %554 = vmatprep.subr.mxu0 0.0
        %555 = vmatpush1.msra.mxu0 0.0
        %556 = vmatprep.subr.mxu0 0.0
        %557 = vmatpush1.msra.mxu0 0.0
        %558 = vmatprep.subr.mxu0 0.0
        %559 = vmatpush1.msra.mxu0 0.0
        %560 = vmatprep.subr.mxu0 0.0
        %561 = vmatpush1.msra.mxu0 0.0
        %562 = vmatprep.subr.mxu0 0.0
        %563 = vmatpush1.msra.mxu0 0.0
        %564 = vmatprep.subr.mxu0 0.0
        %565 = vmatpush1.msra.mxu0 0.0
        %566 = vmatprep.subr.mxu0 0.0
        %567 = vmatpush1.msra.mxu0 0.0
        %568 = vmatprep.subr.mxu0 0.0
        %569 = vmatpush1.msra.mxu0 0.0
        %570 = vmatprep.subr.mxu0 0.0
        %571 = vmatpush1.msra.mxu0 0.0
        %572 = vmatprep.subr.mxu0 0.0
        %573 = vmatpush1.msra.mxu0 0.0
        %574 = vmatprep.subr.mxu0 0.0
        %575 = vmatpush1.msra.mxu0 0.0
        %576 = vmatprep.mubr.f32.mxu0 0.0
        %v577 = vand.u32 %v374, 4294901760
        %578 = vmatmul.mubr.f32.gmra.mrb[0].mxu0 %v577
        %v579 = vpop.f32.mrb[0].mxu0
        %v580 = vadd.f32 %v459, %v579
        %v581 = vpop.f32.mrb[0].mxu0
        %582 = vmatprep.mubr.f32.mxu0 0.0
        %v583 = vand.u32 %v377, 4294901760
        %584 = vmatmul.mubr.f32.gmra.mrb[0].mxu0 %v583
        %v585 = vpop.f32.mrb[0].mxu0
        %v586 = vadd.f32 %v469, %v585
        %v587 = vpop.f32.mrb[0].mxu0
        %588 = vdwg.mxu0
        %589 = vmatprep.subr.mxu0 0.0
        %v590 = vand.u32 %v357, 4294901760
        %v591 = vsub.f32 %v357, %v590
        %592 = vmatpush1.msra.mxu0 %v591
        %593 = vmatprep.subr.mxu0 0.0
        %v594 = vand.u32 %v358, 4294901760
        %v595 = vsub.f32 %v358, %v594
        %596 = vmatpush1.msra.mxu0 %v595
        %597 = vmatprep.subr.mxu0 0.0
        %v598 = vand.u32 %v359, 4294901760
        %v599 = vsub.f32 %v359, %v598
        %600 = vmatpush1.msra.mxu0 %v599
        %601 = vmatprep.subr.mxu0 0.0
        %v602 = vand.u32 %v360, 4294901760
        %v603 = vsub.f32 %v360, %v602
        %604 = vmatpush1.msra.mxu0 %v603
        %605 = vmatprep.subr.mxu0 0.0
        %v606 = vand.u32 %v361, 4294901760
        %v607 = vsub.f32 %v361, %v606
        %608 = vmatpush1.msra.mxu0 %v607
        %609 = vmatprep.subr.mxu0 0.0
        %v610 = vand.u32 %v362, 4294901760
        %v611 = vsub.f32 %v362, %v610
        %612 = vmatpush1.msra.mxu0 %v611
        %613 = vmatprep.subr.mxu0 0.0
        %v614 = vand.u32 %v363, 4294901760
        %v615 = vsub.f32 %v363, %v614
        %616 = vmatpush1.msra.mxu0 %v615
        %617 = vmatprep.subr.mxu0 0.0
        %v618 = vand.u32 %v364, 4294901760
        %v619 = vsub.f32 %v364, %v618
        %620 = vmatpush1.msra.mxu0 %v619
        %621 = vmatprep.subr.mxu0 0.0
        %622 = vmatpush1.msra.mxu0 0.0
        %623 = vmatprep.subr.mxu0 0.0
        %624 = vmatpush1.msra.mxu0 0.0
        %625 = vmatprep.subr.mxu0 0.0
        %626 = vmatpush1.msra.mxu0 0.0
        %627 = vmatprep.subr.mxu0 0.0
        %628 = vmatpush1.msra.mxu0 0.0
        %629 = vmatprep.subr.mxu0 0.0
        %630 = vmatpush1.msra.mxu0 0.0
        %631 = vmatprep.subr.mxu0 0.0
        %632 = vmatpush1.msra.mxu0 0.0
        %633 = vmatprep.subr.mxu0 0.0
        %634 = vmatpush1.msra.mxu0 0.0
        %635 = vmatprep.subr.mxu0 0.0
        %636 = vmatpush1.msra.mxu0 0.0
        %637 = vmatprep.subr.mxu0 0.0
        %638 = vmatpush1.msra.mxu0 0.0
        %639 = vmatprep.subr.mxu0 0.0
        %640 = vmatpush1.msra.mxu0 0.0
        %641 = vmatprep.subr.mxu0 0.0
        %642 = vmatpush1.msra.mxu0 0.0
        %643 = vmatprep.subr.mxu0 0.0
        %644 = vmatpush1.msra.mxu0 0.0
        %645 = vmatprep.subr.mxu0 0.0
        %646 = vmatpush1.msra.mxu0 0.0
        %647 = vmatprep.subr.mxu0 0.0
        %648 = vmatpush1.msra.mxu0 0.0
        %649 = vmatprep.subr.mxu0 0.0
        %650 = vmatpush1.msra.mxu0 0.0
        %651 = vmatprep.subr.mxu0 0.0
        %652 = vmatpush1.msra.mxu0 0.0
        %653 = vmatprep.subr.mxu0 0.0
        %654 = vmatpush1.msra.mxu0 0.0
        %655 = vmatprep.subr.mxu0 0.0
        %656 = vmatpush1.msra.mxu0 0.0
        %657 = vmatprep.subr.mxu0 0.0
        %658 = vmatpush1.msra.mxu0 0.0
        %659 = vmatprep.subr.mxu0 0.0
        %660 = vmatpush1.msra.mxu0 0.0
        %661 = vmatprep.subr.mxu0 0.0
        %662 = vmatpush1.msra.mxu0 0.0
        %663 = vmatprep.subr.mxu0 0.0
        %664 = vmatpush1.msra.mxu0 0.0
        %665 = vmatprep.subr.mxu0 0.0
        %666 = vmatpush1.msra.mxu0 0.0
        %667 = vmatprep.subr.mxu0 0.0
        %668 = vmatpush1.msra.mxu0 0.0
        %669 = vmatprep.mubr.f32.mxu0 0.0
        %v670 = vand.u32 %v374, 4294901760
        %v671 = vsub.f32 %v374, %v670
        %672 = vmatmul.mubr.f32.gmra.mrb[0].mxu0 %v671
        %v673 = vpop.f32.mrb[0].mxu0
        %v674 = vadd.f32 %v580, %v673
        %v675 = vpop.f32.mrb[0].mxu0
        %676 = vmatprep.mubr.f32.mxu0 0.0
        %v677 = vand.u32 %v377, 4294901760
        %v678 = vsub.f32 %v377, %v677
        %679 = vmatmul.mubr.f32.gmra.mrb[0].mxu0 %v678
        %v680 = vpop.f32.mrb[0].mxu0
        %v681 = vadd.f32 %v586, %v680
        %v682 = vpop.f32.mrb[0].mxu0
        %683 = vdwg.mxu0
        %684 = vmatprep.subr.mxu0 0.0
        %v685 = vand.u32 %v357, 4294901760
        %686 = vmatpush1.msra.mxu0 %v685
        %687 = vmatprep.subr.mxu0 0.0
        %v688 = vand.u32 %v358, 4294901760
        %689 = vmatpush1.msra.mxu0 %v688
        %690 = vmatprep.subr.mxu0 0.0
        %v691 = vand.u32 %v359, 4294901760
        %692 = vmatpush1.msra.mxu0 %v691
        %693 = vmatprep.subr.mxu0 0.0
        %v694 = vand.u32 %v360, 4294901760
        %695 = vmatpush1.msra.mxu0 %v694
        %696 = vmatprep.subr.mxu0 0.0
        %v697 = vand.u32 %v361, 4294901760
        %698 = vmatpush1.msra.mxu0 %v697
        %699 = vmatprep.subr.mxu0 0.0
        %v700 = vand.u32 %v362, 4294901760
        %701 = vmatpush1.msra.mxu0 %v700
        %702 = vmatprep.subr.mxu0 0.0
        %v703 = vand.u32 %v363, 4294901760
        %704 = vmatpush1.msra.mxu0 %v703
        %705 = vmatprep.subr.mxu0 0.0
        %v706 = vand.u32 %v364, 4294901760
        %707 = vmatpush1.msra.mxu0 %v706
        %708 = vmatprep.subr.mxu0 0.0
        %709 = vmatpush1.msra.mxu0 0.0
        %710 = vmatprep.subr.mxu0 0.0
        %711 = vmatpush1.msra.mxu0 0.0
        %712 = vmatprep.subr.mxu0 0.0
        %713 = vmatpush1.msra.mxu0 0.0
        %714 = vmatprep.subr.mxu0 0.0
        %715 = vmatpush1.msra.mxu0 0.0
        %716 = vmatprep.subr.mxu0 0.0
        %717 = vmatpush1.msra.mxu0 0.0
        %718 = vmatprep.subr.mxu0 0.0
        %719 = vmatpush1.msra.mxu0 0.0
        %720 = vmatprep.subr.mxu0 0.0
        %721 = vmatpush1.msra.mxu0 0.0
        %722 = vmatprep.subr.mxu0 0.0
        %723 = vmatpush1.msra.mxu0 0.0
        %724 = vmatprep.subr.mxu0 0.0
        %725 = vmatpush1.msra.mxu0 0.0
        %726 = vmatprep.subr.mxu0 0.0
        %727 = vmatpush1.msra.mxu0 0.0
        %728 = vmatprep.subr.mxu0 0.0
        %729 = vmatpush1.msra.mxu0 0.0
        %730 = vmatprep.subr.mxu0 0.0
        %731 = vmatpush1.msra.mxu0 0.0
        %732 = vmatprep.subr.mxu0 0.0
        %733 = vmatpush1.msra.mxu0 0.0
        %734 = vmatprep.subr.mxu0 0.0
        %735 = vmatpush1.msra.mxu0 0.0
        %736 = vmatprep.subr.mxu0 0.0
        %737 = vmatpush1.msra.mxu0 0.0
        %738 = vmatprep.subr.mxu0 0.0
        %739 = vmatpush1.msra.mxu0 0.0
        %740 = vmatprep.subr.mxu0 0.0
        %741 = vmatpush1.msra.mxu0 0.0
        %742 = vmatprep.subr.mxu0 0.0
        %743 = vmatpush1.msra.mxu0 0.0
        %744 = vmatprep.subr.mxu0 0.0
        %745 = vmatpush1.msra.mxu0 0.0
        %746 = vmatprep.subr.mxu0 0.0
        %747 = vmatpush1.msra.mxu0 0.0
        %748 = vmatprep.subr.mxu0 0.0
        %749 = vmatpush1.msra.mxu0 0.0
        %750 = vmatprep.subr.mxu0 0.0
        %751 = vmatpush1.msra.mxu0 0.0
        %752 = vmatprep.subr.mxu0 0.0
        %753 = vmatpush1.msra.mxu0 0.0
        %754 = vmatprep.subr.mxu0 0.0
        %755 = vmatpush1.msra.mxu0 0.0
        %756 = vmatprep.mubr.f32.mxu0 0.0
        %v757 = vand.u32 %v374, 4294901760
        %v758 = vsub.f32 %v374, %v757
        %v759 = vand.u32 %v758, 4294901760
        %760 = vmatmul.mubr.f32.gmra.mrb[0].mxu0 %v759
        %v761 = vpop.f32.mrb[0].mxu0
        %v762 = vadd.f32 %v674, %v761
        %v763 = vpop.f32.mrb[0].mxu0
        %764 = vmatprep.mubr.f32.mxu0 0.0
        %v765 = vand.u32 %v377, 4294901760
        %v766 = vsub.f32 %v377, %v765
        %v767 = vand.u32 %v766, 4294901760
        %768 = vmatmul.mubr.f32.gmra.mrb[0].mxu0 %v767
        %v769 = vpop.f32.mrb[0].mxu0
        %v770 = vadd.f32 %v681, %v769
        %v771 = vpop.f32.mrb[0].mxu0
        %772 = vdwg.mxu0
        %773 = vmatprep.subr.mxu0 0.0
        %v774 = vand.u32 %v357, 4294901760
        %v775 = vsub.f32 %v357, %v774
        %v776 = vand.u32 %v775, 4294901760
        %777 = vmatpush1.msra.mxu0 %v776
        %778 = vmatprep.subr.mxu0 0.0
        %v779 = vand.u32 %v358, 4294901760
        %v780 = vsub.f32 %v358, %v779
        %v781 = vand.u32 %v780, 4294901760
        %782 = vmatpush1.msra.mxu0 %v781
        %783 = vmatprep.subr.mxu0 0.0
        %v784 = vand.u32 %v359, 4294901760
        %v785 = vsub.f32 %v359, %v784
        %v786 = vand.u32 %v785, 4294901760
        %787 = vmatpush1.msra.mxu0 %v786
        %788 = vmatprep.subr.mxu0 0.0
        %v789 = vand.u32 %v360, 4294901760
        %v790 = vsub.f32 %v360, %v789
        %v791 = vand.u32 %v790, 4294901760
        %792 = vmatpush1.msra.mxu0 %v791
        %793 = vmatprep.subr.mxu0 0.0
        %v794 = vand.u32 %v361, 4294901760
        %v795 = vsub.f32 %v361, %v794
        %v796 = vand.u32 %v795, 4294901760
        %797 = vmatpush1.msra.mxu0 %v796
        %798 = vmatprep.subr.mxu0 0.0
        %v799 = vand.u32 %v362, 4294901760
        %v800 = vsub.f32 %v362, %v799
        %v801 = vand.u32 %v800, 4294901760
        %802 = vmatpush1.msra.mxu0 %v801
        %803 = vmatprep.subr.mxu0 0.0
        %v804 = vand.u32 %v363, 4294901760
        %v805 = vsub.f32 %v363, %v804
        %v806 = vand.u32 %v805, 4294901760
        %807 = vmatpush1.msra.mxu0 %v806
        %808 = vmatprep.subr.mxu0 0.0
        %v809 = vand.u32 %v364, 4294901760
        %v810 = vsub.f32 %v364, %v809
        %v811 = vand.u32 %v810, 4294901760
        %812 = vmatpush1.msra.mxu0 %v811
        %813 = vmatprep.subr.mxu0 0.0
        %814 = vmatpush1.msra.mxu0 0.0
        %815 = vmatprep.subr.mxu0 0.0
        %816 = vmatpush1.msra.mxu0 0.0
        %817 = vmatprep.subr.mxu0 0.0
        %818 = vmatpush1.msra.mxu0 0.0
        %819 = vmatprep.subr.mxu0 0.0
        %820 = vmatpush1.msra.mxu0 0.0
        %821 = vmatprep.subr.mxu0 0.0
        %822 = vmatpush1.msra.mxu0 0.0
        %823 = vmatprep.subr.mxu0 0.0
        %824 = vmatpush1.msra.mxu0 0.0
        %825 = vmatprep.subr.mxu0 0.0
        %826 = vmatpush1.msra.mxu0 0.0
        %827 = vmatprep.subr.mxu0 0.0
        %828 = vmatpush1.msra.mxu0 0.0
        %829 = vmatprep.subr.mxu0 0.0
        %830 = vmatpush1.msra.mxu0 0.0
        %831 = vmatprep.subr.mxu0 0.0
        %832 = vmatpush1.msra.mxu0 0.0
        %833 = vmatprep.subr.mxu0 0.0
        %834 = vmatpush1.msra.mxu0 0.0
        %835 = vmatprep.subr.mxu0 0.0
        %836 = vmatpush1.msra.mxu0 0.0
        %837 = vmatprep.subr.mxu0 0.0
        %838 = vmatpush1.msra.mxu0 0.0
        %839 = vmatprep.subr.mxu0 0.0
        %840 = vmatpush1.msra.mxu0 0.0
        %841 = vmatprep.subr.mxu0 0.0
        %842 = vmatpush1.msra.mxu0 0.0
        %843 = vmatprep.subr.mxu0 0.0
        %844 = vmatpush1.msra.mxu0 0.0
        %845 = vmatprep.subr.mxu0 0.0
        %846 = vmatpush1.msra.mxu0 0.0
        %847 = vmatprep.subr.mxu0 0.0
        %848 = vmatpush1.msra.mxu0 0.0
        %849 = vmatprep.subr.mxu0 0.0
        %850 = vmatpush1.msra.mxu0 0.0
        %851 = vmatprep.subr.mxu0 0.0
        %852 = vmatpush1.msra.mxu0 0.0
        %853 = vmatprep.subr.mxu0 0.0
        %854 = vmatpush1.msra.mxu0 0.0
        %855 = vmatprep.subr.mxu0 0.0
        %856 = vmatpush1.msra.mxu0 0.0
        %857 = vmatprep.subr.mxu0 0.0
        %858 = vmatpush1.msra.mxu0 0.0
        %859 = vmatprep.subr.mxu0 0.0
        %860 = vmatpush1.msra.mxu0 0.0
        %861 = vmatprep.mubr.f32.mxu0 0.0
        %v862 = vand.u32 %v374, 4294901760
        %863 = vmatmul.mubr.f32.gmra.mrb[0].mxu0 %v862
        %v864 = vpop.f32.mrb[0].mxu0
        %v865 = vadd.f32 %v762, %v864
        %v866 = vpop.f32.mrb[0].mxu0
        %867 = vmatprep.mubr.f32.mxu0 0.0
        %v868 = vand.u32 %v377, 4294901760
        %869 = vmatmul.mubr.f32.gmra.mrb[0].mxu0 %v868
        %v870 = vpop.f32.mrb[0].mxu0
        %v871 = vadd.f32 %v770, %v870
        %v872 = vpop.f32.mrb[0].mxu0
        %873 = vdwg.mxu0
        %874 = vmatprep.subr.mxu0 0.0
        %v875 = vand.u32 %v357, 4294901760
        %876 = vmatpush1.msra.mxu0 %v875
        %877 = vmatprep.subr.mxu0 0.0
        %v878 = vand.u32 %v358, 4294901760
        %879 = vmatpush1.msra.mxu0 %v878
        %880 = vmatprep.subr.mxu0 0.0
        %v881 = vand.u32 %v359, 4294901760
        %882 = vmatpush1.msra.mxu0 %v881
        %883 = vmatprep.subr.mxu0 0.0
        %v884 = vand.u32 %v360, 4294901760
        %885 = vmatpush1.msra.mxu0 %v884
        %886 = vmatprep.subr.mxu0 0.0
        %v887 = vand.u32 %v361, 4294901760
        %888 = vmatpush1.msra.mxu0 %v887
        %889 = vmatprep.subr.mxu0 0.0
        %v890 = vand.u32 %v362, 4294901760
        %891 = vmatpush1.msra.mxu0 %v890
        %892 = vmatprep.subr.mxu0 0.0
        %v893 = vand.u32 %v363, 4294901760
        %894 = vmatpush1.msra.mxu0 %v893
        %895 = vmatprep.subr.mxu0 0.0
        %v896 = vand.u32 %v364, 4294901760
        %897 = vmatpush1.msra.mxu0 %v896
        %898 = vmatprep.subr.mxu0 0.0
        %899 = vmatpush1.msra.mxu0 0.0
        %900 = vmatprep.subr.mxu0 0.0
        %901 = vmatpush1.msra.mxu0 0.0
        %902 = vmatprep.subr.mxu0 0.0
        %903 = vmatpush1.msra.mxu0 0.0
        %904 = vmatprep.subr.mxu0 0.0
        %905 = vmatpush1.msra.mxu0 0.0
        %906 = vmatprep.subr.mxu0 0.0
        %907 = vmatpush1.msra.mxu0 0.0
        %908 = vmatprep.subr.mxu0 0.0
        %909 = vmatpush1.msra.mxu0 0.0
        %910 = vmatprep.subr.mxu0 0.0
        %911 = vmatpush1.msra.mxu0 0.0
        %912 = vmatprep.subr.mxu0 0.0
        %913 = vmatpush1.msra.mxu0 0.0
        %914 = vmatprep.subr.mxu0 0.0
        %915 = vmatpush1.msra.mxu0 0.0
        %916 = vmatprep.subr.mxu0 0.0
        %917 = vmatpush1.msra.mxu0 0.0
        %918 = vmatprep.subr.mxu0 0.0
        %919 = vmatpush1.msra.mxu0 0.0
        %920 = vmatprep.subr.mxu0 0.0
        %921 = vmatpush1.msra.mxu0 0.0
        %922 = vmatprep.subr.mxu0 0.0
        %923 = vmatpush1.msra.mxu0 0.0
        %924 = vmatprep.subr.mxu0 0.0
        %925 = vmatpush1.msra.mxu0 0.0
        %926 = vmatprep.subr.mxu0 0.0
        %927 = vmatpush1.msra.mxu0 0.0
        %928 = vmatprep.subr.mxu0 0.0
        %929 = vmatpush1.msra.mxu0 0.0
        %930 = vmatprep.subr.mxu0 0.0
        %931 = vmatpush1.msra.mxu0 0.0
        %932 = vmatprep.subr.mxu0 0.0
        %933 = vmatpush1.msra.mxu0 0.0
        %934 = vmatprep.subr.mxu0 0.0
        %935 = vmatpush1.msra.mxu0 0.0
        %936 = vmatprep.subr.mxu0 0.0
        %937 = vmatpush1.msra.mxu0 0.0
        %938 = vmatprep.subr.mxu0 0.0
        %939 = vmatpush1.msra.mxu0 0.0
        %940 = vmatprep.subr.mxu0 0.0
        %941 = vmatpush1.msra.mxu0 0.0
        %942 = vmatprep.subr.mxu0 0.0
        %943 = vmatpush1.msra.mxu0 0.0
        %944 = vmatprep.subr.mxu0 0.0
        %945 = vmatpush1.msra.mxu0 0.0
        %946 = vmatprep.mubr.f32.mxu0 0.0
        %v947 = vand.u32 %v374, 4294901760
        %948 = vmatmul.mubr.f32.gmra.mrb[0].mxu0 %v947
        %v949 = vpop.f32.mrb[0].mxu0
        %v950 = vadd.f32 %v865, %v949
        %v951 = vpop.f32.mrb[0].mxu0
        %952 = vmatprep.mubr.f32.mxu0 0.0
        %v953 = vand.u32 %v377, 4294901760
        %954 = vmatmul.mubr.f32.gmra.mrb[0].mxu0 %v953
        %v955 = vpop.f32.mrb[0].mxu0
        %v956 = vadd.f32 %v871, %v955
        %v957 = vpop.f32.mrb[0].mxu0
        %958 = vdwg.mxu0
        %v959 = vmul.f32 %v950, 0.01
        %v960 = vmul.f32 %v956, 0.01
        %v961 = vmax.f32 %v950, %v959
        %v962 = vmax.f32 %v956, %v960
        %v963 = vld [vmem:[%s3] sm:$0xff]
        %v964 = vld [vmem:[%s3 + $0x8] sm:$0xff]
        %v965 = vld [vmem:[%s3 + $0x10] sm:$0xff]
        %v966 = vld [vmem:[%s3 + $0x18] sm:$0xff]
        %v967 = vld [vmem:[%s3 + $0x20] sm:$0xff]
        %v968 = vld [vmem:[%s3 + $0x28] sm:$0xff]
        %v969 = vld [vmem:[%s3 + $0x30] sm:$0xff]
        %v970 = vld [vmem:[%s3 + $0x38] sm:$0xff]
        %v971 = vld [vmem:[%s3 + $0x40] sm:$0xff]
        %v972 = vld [vmem:[%s3 + $0x48] sm:$0xff]
        %v973 = vld [vmem:[%s3 + $0x50] sm:$0xff]
        %v974 = vld [vmem:[%s3 + $0x58] sm:$0xff]
        %v975 = vld [vmem:[%s3 + $0x60] sm:$0xff]
        %v976 = vld [vmem:[%s3 + $0x68] sm:$0xff]
        %v977 = vld [vmem:[%s3 + $0x70] sm:$0xff]
        %v978 = vld [vmem:[%s3 + $0x78] sm:$0xff]
        %v979 = vld [vmem:[%s4] sm:$0x1]
        %v981 = vlaneseq
        %v982 = vshrl.u32 %v981, 7
        %v983 = vsub.s32 0, %v982
        %v984 = vrot.slane %v979, %v983
        %986 = vmatprep.subr.mxu0 0.0
        %v987 = vand.u32 %v963, 4294901760
        %988 = vmatpush1.msra.mxu0 %v987
        %989 = vmatprep.subr.mxu0 0.0
        %v990 = vand.u32 %v964, 4294901760
        %991 = vmatpush1.msra.mxu0 %v990
        %992 = vmatprep.subr.mxu0 0.0
        %v993 = vand.u32 %v965, 4294901760
        %994 = vmatpush1.msra.mxu0 %v993
        %995 = vmatprep.subr.mxu0 0.0
        %v996 = vand.u32 %v966, 4294901760
        %997 = vmatpush1.msra.mxu0 %v996
        %998 = vmatprep.subr.mxu0 0.0
        %v999 = vand.u32 %v967, 4294901760
        %1000 = vmatpush1.msra.mxu0 %v999
        %1001 = vmatprep.subr.mxu0 0.0
        %v1002 = vand.u32 %v968, 4294901760
        %1003 = vmatpush1.msra.mxu0 %v1002
        %1004 = vmatprep.subr.mxu0 0.0
        %v1005 = vand.u32 %v969, 4294901760
        %1006 = vmatpush1.msra.mxu0 %v1005
        %1007 = vmatprep.subr.mxu0 0.0
        %v1008 = vand.u32 %v970, 4294901760
        %1009 = vmatpush1.msra.mxu0 %v1008
        %1010 = vmatprep.subr.mxu0 0.0
        %v1011 = vand.u32 %v971, 4294901760
        %1012 = vmatpush1.msra.mxu0 %v1011
        %1013 = vmatprep.subr.mxu0 0.0
        %v1014 = vand.u32 %v972, 4294901760
        %1015 = vmatpush1.msra.mxu0 %v1014
        %1016 = vmatprep.subr.mxu0 0.0
        %v1017 = vand.u32 %v973, 4294901760
        %1018 = vmatpush1.msra.mxu0 %v1017
        %1019 = vmatprep.subr.mxu0 0.0
        %v1020 = vand.u32 %v974, 4294901760
        %1021 = vmatpush1.msra.mxu0 %v1020
        %1022 = vmatprep.subr.mxu0 0.0
        %v1023 = vand.u32 %v975, 4294901760
        %1024 = vmatpush1.msra.mxu0 %v1023
        %1025 = vmatprep.subr.mxu0 0.0
        %v1026 = vand.u32 %v976, 4294901760
        %1027 = vmatpush1.msra.mxu0 %v1026
        %1028 = vmatprep.subr.mxu0 0.0
        %v1029 = vand.u32 %v977, 4294901760
        %1030 = vmatpush1.msra.mxu0 %v1029
        %1031 = vmatprep.subr.mxu0 0.0
        %v1032 = vand.u32 %v978, 4294901760
        %1033 = vmatpush1.msra.mxu0 %v1032
        %1034 = vmatprep.subr.mxu0 0.0
        %1035 = vmatpush1.msra.mxu0 0.0
        %1036 = vmatprep.subr.mxu0 0.0
        %1037 = vmatpush1.msra.mxu0 0.0
        %1038 = vmatprep.subr.mxu0 0.0
        %1039 = vmatpush1.msra.mxu0 0.0
        %1040 = vmatprep.subr.mxu0 0.0
        %1041 = vmatpush1.msra.mxu0 0.0
        %1042 = vmatprep.subr.mxu0 0.0
        %1043 = vmatpush1.msra.mxu0 0.0
        %1044 = vmatprep.subr.mxu0 0.0
        %1045 = vmatpush1.msra.mxu0 0.0
        %1046 = vmatprep.subr.mxu0 0.0
        %1047 = vmatpush1.msra.mxu0 0.0
        %1048 = vmatprep.subr.mxu0 0.0
        %1049 = vmatpush1.msra.mxu0 0.0
        %1050 = vmatprep.subr.mxu0 0.0
        %1051 = vmatpush1.msra.mxu0 0.0
        %1052 = vmatprep.subr.mxu0 0.0
        %1053 = vmatpush1.msra.mxu0 0.0
        %1054 = vmatprep.subr.mxu0 0.0
        %1055 = vmatpush1.msra.mxu0 0.0
        %1056 = vmatprep.subr.mxu0 0.0
        %1057 = vmatpush1.msra.mxu0 0.0
        %1058 = vmatprep.subr.mxu0 0.0
        %1059 = vmatpush1.msra.mxu0 0.0
        %1060 = vmatprep.subr.mxu0 0.0
        %1061 = vmatpush1.msra.mxu0 0.0
        %1062 = vmatprep.subr.mxu0 0.0
        %1063 = vmatpush1.msra.mxu0 0.0
        %1064 = vmatprep.subr.mxu0 0.0
        %1065 = vmatpush1.msra.mxu0 0.0
        %1066 = vmatprep.mubr.f32.mxu0 0.0
        %v1067 = vand.u32 %v961, 4294901760
        %v1068 = vsub.f32 %v961, %v1067
        %v1069 = vand.u32 %v1068, 4294901760
        %v1070 = vsub.f32 %v1068, %v1069
        %v1071 = vand.u32 %v1070, 4294901760
        %1072 = vmatmul.mubr.f32.gmra.mrb[0].mxu0 %v1071
        %v1073 = vpop.f32.mrb[0].mxu0
        %v1074 = vadd.f32 %v984, %v1073
        %v1075 = vpop.f32.mrb[0].mxu0
        %1076 = vmatprep.mubr.f32.mxu0 0.0
        %v1077 = vand.u32 %v962, 4294901760
        %v1078 = vsub.f32 %v962, %v1077
        %v1079 = vand.u32 %v1078, 4294901760
        %v1080 = vsub.f32 %v1078, %v1079
        %v1081 = vand.u32 %v1080, 4294901760
        %1082 = vmatmul.mubr.f32.gmra.mrb[0].mxu0 %v1081
        %v1083 = vpop.f32.mrb[0].mxu0
        %v1084 = vadd.f32 %v984, %v1083
        %v1085 = vpop.f32.mrb[0].mxu0
        %1086 = vdwg.mxu0
        %1087 = vmatprep.subr.mxu0 0.0
        %v1088 = vand.u32 %v963, 4294901760
        %v1089 = vsub.f32 %v963, %v1088
        %v1090 = vand.u32 %v1089, 4294901760
        %v1091 = vsub.f32 %v1089, %v1090
        %v1092 = vand.u32 %v1091, 4294901760
        %1093 = vmatpush1.msra.mxu0 %v1092
        %1094 = vmatprep.subr.mxu0 0.0
        %v1095 = vand.u32 %v964, 4294901760
        %v1096 = vsub.f32 %v964, %v1095
        %v1097 = vand.u32 %v1096, 4294901760
        %v1098 = vsub.f32 %v1096, %v1097
        %v1099 = vand.u32 %v1098, 4294901760
        %1100 = vmatpush1.msra.mxu0 %v1099
        %1101 = vmatprep.subr.mxu0 0.0
        %v1102 = vand.u32 %v965, 4294901760
        %v1103 = vsub.f32 %v965, %v1102
        %v1104 = vand.u32 %v1103, 4294901760
        %v1105 = vsub.f32 %v1103, %v1104
        %v1106 = vand.u32 %v1105, 4294901760
        %1107 = vmatpush1.msra.mxu0 %v1106
        %1108 = vmatprep.subr.mxu0 0.0
        %v1109 = vand.u32 %v966, 4294901760
        %v1110 = vsub.f32 %v966, %v1109
        %v1111 = vand.u32 %v1110, 4294901760
        %v1112 = vsub.f32 %v1110, %v1111
        %v1113 = vand.u32 %v1112, 4294901760
        %1114 = vmatpush1.msra.mxu0 %v1113
        %1115 = vmatprep.subr.mxu0 0.0
        %v1116 = vand.u32 %v967, 4294901760
        %v1117 = vsub.f32 %v967, %v1116
        %v1118 = vand.u32 %v1117, 4294901760
        %v1119 = vsub.f32 %v1117, %v1118
        %v1120 = vand.u32 %v1119, 4294901760
        %1121 = vmatpush1.msra.mxu0 %v1120
        %1122 = vmatprep.subr.mxu0 0.0
        %v1123 = vand.u32 %v968, 4294901760
        %v1124 = vsub.f32 %v968, %v1123
        %v1125 = vand.u32 %v1124, 4294901760
        %v1126 = vsub.f32 %v1124, %v1125
        %v1127 = vand.u32 %v1126, 4294901760
        %1128 = vmatpush1.msra.mxu0 %v1127
        %1129 = vmatprep.subr.mxu0 0.0
        %v1130 = vand.u32 %v969, 4294901760
        %v1131 = vsub.f32 %v969, %v1130
        %v1132 = vand.u32 %v1131, 4294901760
        %v1133 = vsub.f32 %v1131, %v1132
        %v1134 = vand.u32 %v1133, 4294901760
        %1135 = vmatpush1.msra.mxu0 %v1134
        %1136 = vmatprep.subr.mxu0 0.0
        %v1137 = vand.u32 %v970, 4294901760
        %v1138 = vsub.f32 %v970, %v1137
        %v1139 = vand.u32 %v1138, 4294901760
        %v1140 = vsub.f32 %v1138, %v1139
        %v1141 = vand.u32 %v1140, 4294901760
        %1142 = vmatpush1.msra.mxu0 %v1141
        %1143 = vmatprep.subr.mxu0 0.0
        %v1144 = vand.u32 %v971, 4294901760
        %v1145 = vsub.f32 %v971, %v1144
        %v1146 = vand.u32 %v1145, 4294901760
        %v1147 = vsub.f32 %v1145, %v1146
        %v1148 = vand.u32 %v1147, 4294901760
        %1149 = vmatpush1.msra.mxu0 %v1148
        %1150 = vmatprep.subr.mxu0 0.0
        %v1151 = vand.u32 %v972, 4294901760
        %v1152 = vsub.f32 %v972, %v1151
        %v1153 = vand.u32 %v1152, 4294901760
        %v1154 = vsub.f32 %v1152, %v1153
        %v1155 = vand.u32 %v1154, 4294901760
        %1156 = vmatpush1.msra.mxu0 %v1155
        %1157 = vmatprep.subr.mxu0 0.0
        %v1158 = vand.u32 %v973, 4294901760
        %v1159 = vsub.f32 %v973, %v1158
        %v1160 = vand.u32 %v1159, 4294901760
        %v1161 = vsub.f32 %v1159, %v1160
        %v1162 = vand.u32 %v1161, 4294901760
        %1163 = vmatpush1.msra.mxu0 %v1162
        %1164 = vmatprep.subr.mxu0 0.0
        %v1165 = vand.u32 %v974, 4294901760
        %v1166 = vsub.f32 %v974, %v1165
        %v1167 = vand.u32 %v1166, 4294901760
        %v1168 = vsub.f32 %v1166, %v1167
        %v1169 = vand.u32 %v1168, 4294901760
        %1170 = vmatpush1.msra.mxu0 %v1169
        %1171 = vmatprep.subr.mxu0 0.0
        %v1172 = vand.u32 %v975, 4294901760
        %v1173 = vsub.f32 %v975, %v1172
        %v1174 = vand.u32 %v1173, 4294901760
        %v1175 = vsub.f32 %v1173, %v1174
        %v1176 = vand.u32 %v1175, 4294901760
        %1177 = vmatpush1.msra.mxu0 %v1176
        %1178 = vmatprep.subr.mxu0 0.0
        %v1179 = vand.u32 %v976, 4294901760
        %v1180 = vsub.f32 %v976, %v1179
        %v1181 = vand.u32 %v1180, 4294901760
        %v1182 = vsub.f32 %v1180, %v1181
        %v1183 = vand.u32 %v1182, 4294901760
        %1184 = vmatpush1.msra.mxu0 %v1183
        %1185 = vmatprep.subr.mxu0 0.0
        %v1186 = vand.u32 %v977, 4294901760
        %v1187 = vsub.f32 %v977, %v1186
        %v1188 = vand.u32 %v1187, 4294901760
        %v1189 = vsub.f32 %v1187, %v1188
        %v1190 = vand.u32 %v1189, 4294901760
        %1191 = vmatpush1.msra.mxu0 %v1190
        %1192 = vmatprep.subr.mxu0 0.0
        %v1193 = vand.u32 %v978, 4294901760
        %v1194 = vsub.f32 %v978, %v1193
        %v1195 = vand.u32 %v1194, 4294901760
        %v1196 = vsub.f32 %v1194, %v1195
        %v1197 = vand.u32 %v1196, 4294901760
        %1198 = vmatpush1.msra.mxu0 %v1197
        %1199 = vmatprep.subr.mxu0 0.0
        %1200 = vmatpush1.msra.mxu0 0.0
        %1201 = vmatprep.subr.mxu0 0.0
        %1202 = vmatpush1.msra.mxu0 0.0
        %1203 = vmatprep.subr.mxu0 0.0
        %1204 = vmatpush1.msra.mxu0 0.0
        %1205 = vmatprep.subr.mxu0 0.0
        %1206 = vmatpush1.msra.mxu0 0.0
        %1207 = vmatprep.subr.mxu0 0.0
        %1208 = vmatpush1.msra.mxu0 0.0
        %1209 = vmatprep.subr.mxu0 0.0
        %1210 = vmatpush1.msra.mxu0 0.0
        %1211 = vmatprep.subr.mxu0 0.0
        %1212 = vmatpush1.msra.mxu0 0.0
        %1213 = vmatprep.subr.mxu0 0.0
        %1214 = vmatpush1.msra.mxu0 0.0
        %1215 = vmatprep.subr.mxu0 0.0
        %1216 = vmatpush1.msra.mxu0 0.0
        %1217 = vmatprep.subr.mxu0 0.0
        %1218 = vmatpush1.msra.mxu0 0.0
        %1219 = vmatprep.subr.mxu0 0.0
        %1220 = vmatpush1.msra.mxu0 0.0
        %1221 = vmatprep.subr.mxu0 0.0
        %1222 = vmatpush1.msra.mxu0 0.0
        %1223 = vmatprep.subr.mxu0 0.0
        %1224 = vmatpush1.msra.mxu0 0.0
        %1225 = vmatprep.subr.mxu0 0.0
        %1226 = vmatpush1.msra.mxu0 0.0
        %1227 = vmatprep.subr.mxu0 0.0
        %1228 = vmatpush1.msra.mxu0 0.0
        %1229 = vmatprep.subr.mxu0 0.0
        %1230 = vmatpush1.msra.mxu0 0.0
        %1231 = vmatprep.mubr.f32.mxu0 0.0
        %v1232 = vand.u32 %v961, 4294901760
        %1233 = vmatmul.mubr.f32.gmra.mrb[0].mxu0 %v1232
        %v1234 = vpop.f32.mrb[0].mxu0
        %v1235 = vadd.f32 %v1074, %v1234
        %v1236 = vpop.f32.mrb[0].mxu0
        %1237 = vmatprep.mubr.f32.mxu0 0.0
        %v1238 = vand.u32 %v962, 4294901760
        %1239 = vmatmul.mubr.f32.gmra.mrb[0].mxu0 %v1238
        %v1240 = vpop.f32.mrb[0].mxu0
        %v1241 = vadd.f32 %v1084, %v1240
        %v1242 = vpop.f32.mrb[0].mxu0
        %1243 = vdwg.mxu0
        %1244 = vmatprep.subr.mxu0 0.0
        %v1245 = vand.u32 %v963, 4294901760
        %v1246 = vsub.f32 %v963, %v1245
        %1247 = vmatpush1.msra.mxu0 %v1246
        %1248 = vmatprep.subr.mxu0 0.0
        %v1249 = vand.u32 %v964, 4294901760
        %v1250 = vsub.f32 %v964, %v1249
        %1251 = vmatpush1.msra.mxu0 %v1250
        %1252 = vmatprep.subr.mxu0 0.0
        %v1253 = vand.u32 %v965, 4294901760
        %v1254 = vsub.f32 %v965, %v1253
        %1255 = vmatpush1.msra.mxu0 %v1254
        %1256 = vmatprep.subr.mxu0 0.0
        %v1257 = vand.u32 %v966, 4294901760
        %v1258 = vsub.f32 %v966, %v1257
        %1259 = vmatpush1.msra.mxu0 %v1258
        %1260 = vmatprep.subr.mxu0 0.0
        %v1261 = vand.u32 %v967, 4294901760
        %v1262 = vsub.f32 %v967, %v1261
        %1263 = vmatpush1.msra.mxu0 %v1262
        %1264 = vmatprep.subr.mxu0 0.0
        %v1265 = vand.u32 %v968, 4294901760
        %v1266 = vsub.f32 %v968, %v1265
        %1267 = vmatpush1.msra.mxu0 %v1266
        %1268 = vmatprep.subr.mxu0 0.0
        %v1269 = vand.u32 %v969, 4294901760
        %v1270 = vsub.f32 %v969, %v1269
        %1271 = vmatpush1.msra.mxu0 %v1270
        %1272 = vmatprep.subr.mxu0 0.0
        %v1273 = vand.u32 %v970, 4294901760
        %v1274 = vsub.f32 %v970, %v1273
        %1275 = vmatpush1.msra.mxu0 %v1274
        %1276 = vmatprep.subr.mxu0 0.0
        %v1277 = vand.u32 %v971, 4294901760
        %v1278 = vsub.f32 %v971, %v1277
        %1279 = vmatpush1.msra.mxu0 %v1278
        %1280 = vmatprep.subr.mxu0 0.0
        %v1281 = vand.u32 %v972, 4294901760
        %v1282 = vsub.f32 %v972, %v1281
        %1283 = vmatpush1.msra.mxu0 %v1282
        %1284 = vmatprep.subr.mxu0 0.0
        %v1285 = vand.u32 %v973, 4294901760
        %v1286 = vsub.f32 %v973, %v1285
        %1287 = vmatpush1.msra.mxu0 %v1286
        %1288 = vmatprep.subr.mxu0 0.0
        %v1289 = vand.u32 %v974, 4294901760
        %v1290 = vsub.f32 %v974, %v1289
        %1291 = vmatpush1.msra.mxu0 %v1290
        %1292 = vmatprep.subr.mxu0 0.0
        %v1293 = vand.u32 %v975, 4294901760
        %v1294 = vsub.f32 %v975, %v1293
        %1295 = vmatpush1.msra.mxu0 %v1294
        %1296 = vmatprep.subr.mxu0 0.0
        %v1297 = vand.u32 %v976, 4294901760
        %v1298 = vsub.f32 %v976, %v1297
        %1299 = vmatpush1.msra.mxu0 %v1298
        %1300 = vmatprep.subr.mxu0 0.0
        %v1301 = vand.u32 %v977, 4294901760
        %v1302 = vsub.f32 %v977, %v1301
        %1303 = vmatpush1.msra.mxu0 %v1302
        %1304 = vmatprep.subr.mxu0 0.0
        %v1305 = vand.u32 %v978, 4294901760
        %v1306 = vsub.f32 %v978, %v1305
        %1307 = vmatpush1.msra.mxu0 %v1306
        %1308 = vmatprep.subr.mxu0 0.0
        %1309 = vmatpush1.msra.mxu0 0.0
        %1310 = vmatprep.subr.mxu0 0.0
        %1311 = vmatpush1.msra.mxu0 0.0
        %1312 = vmatprep.subr.mxu0 0.0
        %1313 = vmatpush1.msra.mxu0 0.0
        %1314 = vmatprep.subr.mxu0 0.0
        %1315 = vmatpush1.msra.mxu0 0.0
        %1316 = vmatprep.subr.mxu0 0.0
        %1317 = vmatpush1.msra.mxu0 0.0
        %1318 = vmatprep.subr.mxu0 0.0
        %1319 = vmatpush1.msra.mxu0 0.0
        %1320 = vmatprep.subr.mxu0 0.0
        %1321 = vmatpush1.msra.mxu0 0.0
        %1322 = vmatprep.subr.mxu0 0.0
        %1323 = vmatpush1.msra.mxu0 0.0
        %1324 = vmatprep.subr.mxu0 0.0
        %1325 = vmatpush1.msra.mxu0 0.0
        %1326 = vmatprep.subr.mxu0 0.0
        %1327 = vmatpush1.msra.mxu0 0.0
        %1328 = vmatprep.subr.mxu0 0.0
        %1329 = vmatpush1.msra.mxu0 0.0
        %1330 = vmatprep.subr.mxu0 0.0
        %1331 = vmatpush1.msra.mxu0 0.0
        %1332 = vmatprep.subr.mxu0 0.0
        %1333 = vmatpush1.msra.mxu0 0.0
        %1334 = vmatprep.subr.mxu0 0.0
        %1335 = vmatpush1.msra.mxu0 0.0
        %1336 = vmatprep.subr.mxu0 0.0
        %1337 = vmatpush1.msra.mxu0 0.0
        %1338 = vmatprep.subr.mxu0 0.0
        %1339 = vmatpush1.msra.mxu0 0.0
        %1340 = vmatprep.mubr.f32.mxu0 0.0
        %v1341 = vand.u32 %v961, 4294901760
        %v1342 = vsub.f32 %v961, %v1341
        %1343 = vmatmul.mubr.f32.gmra.mrb[0].mxu0 %v1342
        %v1344 = vpop.f32.mrb[0].mxu0
        %v1345 = vadd.f32 %v1235, %v1344
        %v1346 = vpop.f32.mrb[0].mxu0
        %1347 = vmatprep.mubr.f32.mxu0 0.0
        %v1348 = vand.u32 %v962, 4294901760
        %v1349 = vsub.f32 %v962, %v1348
        %1350 = vmatmul.mubr.f32.gmra.mrb[0].mxu0 %v1349
        %v1351 = vpop.f32.mrb[0].mxu0
        %v1352 = vadd.f32 %v1241, %v1351
        %v1353 = vpop.f32.mrb[0].mxu0
        %1354 = vdwg.mxu0
        %1355 = vmatprep.subr.mxu0 0.0
        %v1356 = vand.u32 %v963, 4294901760
        %1357 = vmatpush1.msra.mxu0 %v1356
        %1358 = vmatprep.subr.mxu0 0.0
        %v1359 = vand.u32 %v964, 4294901760
        %1360 = vmatpush1.msra.mxu0 %v1359
        %1361 = vmatprep.subr.mxu0 0.0
        %v1362 = vand.u32 %v965, 4294901760
        %1363 = vmatpush1.msra.mxu0 %v1362
        %1364 = vmatprep.subr.mxu0 0.0
        %v1365 = vand.u32 %v966, 4294901760
        %1366 = vmatpush1.msra.mxu0 %v1365
        %1367 = vmatprep.subr.mxu0 0.0
        %v1368 = vand.u32 %v967, 4294901760
        %1369 = vmatpush1.msra.mxu0 %v1368
        %1370 = vmatprep.subr.mxu0 0.0
        %v1371 = vand.u32 %v968, 4294901760
        %1372 = vmatpush1.msra.mxu0 %v1371
        %1373 = vmatprep.subr.mxu0 0.0
        %v1374 = vand.u32 %v969, 4294901760
        %1375 = vmatpush1.msra.mxu0 %v1374
        %1376 = vmatprep.subr.mxu0 0.0
        %v1377 = vand.u32 %v970, 4294901760
        %1378 = vmatpush1.msra.mxu0 %v1377
        %1379 = vmatprep.subr.mxu0 0.0
        %v1380 = vand.u32 %v971, 4294901760
        %1381 = vmatpush1.msra.mxu0 %v1380
        %1382 = vmatprep.subr.mxu0 0.0
        %v1383 = vand.u32 %v972, 4294901760
        %1384 = vmatpush1.msra.mxu0 %v1383
        %1385 = vmatprep.subr.mxu0 0.0
        %v1386 = vand.u32 %v973, 4294901760
        %1387 = vmatpush1.msra.mxu0 %v1386
        %1388 = vmatprep.subr.mxu0 0.0
        %v1389 = vand.u32 %v974, 4294901760
        %1390 = vmatpush1.msra.mxu0 %v1389
        %1391 = vmatprep.subr.mxu0 0.0
        %v1392 = vand.u32 %v975, 4294901760
        %1393 = vmatpush1.msra.mxu0 %v1392
        %1394 = vmatprep.subr.mxu0 0.0
        %v1395 = vand.u32 %v976, 4294901760
        %1396 = vmatpush1.msra.mxu0 %v1395
        %1397 = vmatprep.subr.mxu0 0.0
        %v1398 = vand.u32 %v977, 4294901760
        %1399 = vmatpush1.msra.mxu0 %v1398
        %1400 = vmatprep.subr.mxu0 0.0
        %v1401 = vand.u32 %v978, 4294901760
        %1402 = vmatpush1.msra.mxu0 %v1401
        %1403 = vmatprep.subr.mxu0 0.0
        %1404 = vmatpush1.msra.mxu0 0.0
        %1405 = vmatprep.subr.mxu0 0.0
        %1406 = vmatpush1.msra.mxu0 0.0
        %1407 = vmatprep.subr.mxu0 0.0
        %1408 = vmatpush1.msra.mxu0 0.0
        %1409 = vmatprep.subr.mxu0 0.0
        %1410 = vmatpush1.msra.mxu0 0.0
        %1411 = vmatprep.subr.mxu0 0.0
        %1412 = vmatpush1.msra.mxu0 0.0
        %1413 = vmatprep.subr.mxu0 0.0
        %1414 = vmatpush1.msra.mxu0 0.0
        %1415 = vmatprep.subr.mxu0 0.0
        %1416 = vmatpush1.msra.mxu0 0.0
        %1417 = vmatprep.subr.mxu0 0.0
        %1418 = vmatpush1.msra.mxu0 0.0
        %1419 = vmatprep.subr.mxu0 0.0
        %1420 = vmatpush1.msra.mxu0 0.0
        %1421 = vmatprep.subr.mxu0 0.0
        %1422 = vmatpush1.msra.mxu0 0.0
        %1423 = vmatprep.subr.mxu0 0.0
        %1424 = vmatpush1.msra.mxu0 0.0
        %1425 = vmatprep.subr.mxu0 0.0
        %1426 = vmatpush1.msra.mxu0 0.0
        %1427 = vmatprep.subr.mxu0 0.0
        %1428 = vmatpush1.msra.mxu0 0.0
        %1429 = vmatprep.subr.mxu0 0.0
        %1430 = vmatpush1.msra.mxu0 0.0
        %1431 = vmatprep.subr.mxu0 0.0
        %1432 = vmatpush1.msra.mxu0 0.0
        %1433 = vmatprep.subr.mxu0 0.0
        %1434 = vmatpush1.msra.mxu0 0.0
        %1435 = vmatprep.mubr.f32.mxu0 0.0
        %v1436 = vand.u32 %v961, 4294901760
        %v1437 = vsub.f32 %v961, %v1436
        %v1438 = vand.u32 %v1437, 4294901760
        %1439 = vmatmul.mubr.f32.gmra.mrb[0].mxu0 %v1438
        %v1440 = vpop.f32.mrb[0].mxu0
        %v1441 = vadd.f32 %v1345, %v1440
        %v1442 = vpop.f32.mrb[0].mxu0
        %1443 = vmatprep.mubr.f32.mxu0 0.0
        %v1444 = vand.u32 %v962, 4294901760
        %v1445 = vsub.f32 %v962, %v1444
        %v1446 = vand.u32 %v1445, 4294901760
        %1447 = vmatmul.mubr.f32.gmra.mrb[0].mxu0 %v1446
        %v1448 = vpop.f32.mrb[0].mxu0
        %v1449 = vadd.f32 %v1352, %v1448
        %v1450 = vpop.f32.mrb[0].mxu0
        %1451 = vdwg.mxu0
        %1452 = vmatprep.subr.mxu0 0.0
        %v1453 = vand.u32 %v963, 4294901760
        %v1454 = vsub.f32 %v963, %v1453
        %v1455 = vand.u32 %v1454, 4294901760
        %1456 = vmatpush1.msra.mxu0 %v1455
        %1457 = vmatprep.subr.mxu0 0.0
        %v1458 = vand.u32 %v964, 4294901760
        %v1459 = vsub.f32 %v964, %v1458
        %v1460 = vand.u32 %v1459, 4294901760
        %1461 = vmatpush1.msra.mxu0 %v1460
        %1462 = vmatprep.subr.mxu0 0.0
        %v1463 = vand.u32 %v965, 4294901760
        %v1464 = vsub.f32 %v965, %v1463
        %v1465 = vand.u32 %v1464, 4294901760
        %1466 = vmatpush1.msra.mxu0 %v1465
        %1467 = vmatprep.subr.mxu0 0.0
        %v1468 = vand.u32 %v966, 4294901760
        %v1469 = vsub.f32 %v966, %v1468
        %v1470 = vand.u32 %v1469, 4294901760
        %1471 = vmatpush1.msra.mxu0 %v1470
        %1472 = vmatprep.subr.mxu0 0.0
        %v1473 = vand.u32 %v967, 4294901760
        %v1474 = vsub.f32 %v967, %v1473
        %v1475 = vand.u32 %v1474, 4294901760
        %1476 = vmatpush1.msra.mxu0 %v1475
        %1477 = vmatprep.subr.mxu0 0.0
        %v1478 = vand.u32 %v968, 4294901760
        %v1479 = vsub.f32 %v968, %v1478
        %v1480 = vand.u32 %v1479, 4294901760
        %1481 = vmatpush1.msra.mxu0 %v1480
        %1482 = vmatprep.subr.mxu0 0.0
        %v1483 = vand.u32 %v969, 4294901760
        %v1484 = vsub.f32 %v969, %v1483
        %v1485 = vand.u32 %v1484, 4294901760
        %1486 = vmatpush1.msra.mxu0 %v1485
        %1487 = vmatprep.subr.mxu0 0.0
        %v1488 = vand.u32 %v970, 4294901760
        %v1489 = vsub.f32 %v970, %v1488
        %v1490 = vand.u32 %v1489, 4294901760
        %1491 = vmatpush1.msra.mxu0 %v1490
        %1492 = vmatprep.subr.mxu0 0.0
        %v1493 = vand.u32 %v971, 4294901760
        %v1494 = vsub.f32 %v971, %v1493
        %v1495 = vand.u32 %v1494, 4294901760
        %1496 = vmatpush1.msra.mxu0 %v1495
        %1497 = vmatprep.subr.mxu0 0.0
        %v1498 = vand.u32 %v972, 4294901760
        %v1499 = vsub.f32 %v972, %v1498
        %v1500 = vand.u32 %v1499, 4294901760
        %1501 = vmatpush1.msra.mxu0 %v1500
        %1502 = vmatprep.subr.mxu0 0.0
        %v1503 = vand.u32 %v973, 4294901760
        %v1504 = vsub.f32 %v973, %v1503
        %v1505 = vand.u32 %v1504, 4294901760
        %1506 = vmatpush1.msra.mxu0 %v1505
        %1507 = vmatprep.subr.mxu0 0.0
        %v1508 = vand.u32 %v974, 4294901760
        %v1509 = vsub.f32 %v974, %v1508
        %v1510 = vand.u32 %v1509, 4294901760
        %1511 = vmatpush1.msra.mxu0 %v1510
        %1512 = vmatprep.subr.mxu0 0.0
        %v1513 = vand.u32 %v975, 4294901760
        %v1514 = vsub.f32 %v975, %v1513
        %v1515 = vand.u32 %v1514, 4294901760
        %1516 = vmatpush1.msra.mxu0 %v1515
        %1517 = vmatprep.subr.mxu0 0.0
        %v1518 = vand.u32 %v976, 4294901760
        %v1519 = vsub.f32 %v976, %v1518
        %v1520 = vand.u32 %v1519, 4294901760
        %1521 = vmatpush1.msra.mxu0 %v1520
        %1522 = vmatprep.subr.mxu0 0.0
        %v1523 = vand.u32 %v977, 4294901760
        %v1524 = vsub.f32 %v977, %v1523
        %v1525 = vand.u32 %v1524, 4294901760
        %1526 = vmatpush1.msra.mxu0 %v1525
        %1527 = vmatprep.subr.mxu0 0.0
        %v1528 = vand.u32 %v978, 4294901760
        %v1529 = vsub.f32 %v978, %v1528
        %v1530 = vand.u32 %v1529, 4294901760
        %1531 = vmatpush1.msra.mxu0 %v1530
        %1532 = vmatprep.subr.mxu0 0.0
        %1533 = vmatpush1.msra.mxu0 0.0
        %1534 = vmatprep.subr.mxu0 0.0
        %1535 = vmatpush1.msra.mxu0 0.0
        %1536 = vmatprep.subr.mxu0 0.0
        %1537 = vmatpush1.msra.mxu0 0.0
        %1538 = vmatprep.subr.mxu0 0.0
        %1539 = vmatpush1.msra.mxu0 0.0
        %1540 = vmatprep.subr.mxu0 0.0
        %1541 = vmatpush1.msra.mxu0 0.0
        %1542 = vmatprep.subr.mxu0 0.0
        %1543 = vmatpush1.msra.mxu0 0.0
        %1544 = vmatprep.subr.mxu0 0.0
        %1545 = vmatpush1.msra.mxu0 0.0
        %1546 = vmatprep.subr.mxu0 0.0
        %1547 = vmatpush1.msra.mxu0 0.0
        %1548 = vmatprep.subr.mxu0 0.0
        %1549 = vmatpush1.msra.mxu0 0.0
        %1550 = vmatprep.subr.mxu0 0.0
        %1551 = vmatpush1.msra.mxu0 0.0
        %1552 = vmatprep.subr.mxu0 0.0
        %1553 = vmatpush1.msra.mxu0 0.0
        %1554 = vmatprep.subr.mxu0 0.0
        %1555 = vmatpush1.msra.mxu0 0.0
        %1556 = vmatprep.subr.mxu0 0.0
        %1557 = vmatpush1.msra.mxu0 0.0
        %1558 = vmatprep.subr.mxu0 0.0
        %1559 = vmatpush1.msra.mxu0 0.0
        %1560 = vmatprep.subr.mxu0 0.0
        %1561 = vmatpush1.msra.mxu0 0.0
        %1562 = vmatprep.subr.mxu0 0.0
        %1563 = vmatpush1.msra.mxu0 0.0
        %1564 = vmatprep.mubr.f32.mxu0 0.0
        %v1565 = vand.u32 %v961, 4294901760
        %1566 = vmatmul.mubr.f32.gmra.mrb[0].mxu0 %v1565
        %v1567 = vpop.f32.mrb[0].mxu0
        %v1568 = vadd.f32 %v1441, %v1567
        %v1569 = vpop.f32.mrb[0].mxu0
        %1570 = vmatprep.mubr.f32.mxu0 0.0
        %v1571 = vand.u32 %v962, 4294901760
        %1572 = vmatmul.mubr.f32.gmra.mrb[0].mxu0 %v1571
        %v1573 = vpop.f32.mrb[0].mxu0
        %v1574 = vadd.f32 %v1449, %v1573
        %v1575 = vpop.f32.mrb[0].mxu0
        %1576 = vdwg.mxu0
        %1577 = vmatprep.subr.mxu0 0.0
        %v1578 = vand.u32 %v963, 4294901760
        %1579 = vmatpush1.msra.mxu0 %v1578
        %1580 = vmatprep.subr.mxu0 0.0
        %v1581 = vand.u32 %v964, 4294901760
        %1582 = vmatpush1.msra.mxu0 %v1581
        %1583 = vmatprep.subr.mxu0 0.0
        %v1584 = vand.u32 %v965, 4294901760
        %1585 = vmatpush1.msra.mxu0 %v1584
        %1586 = vmatprep.subr.mxu0 0.0
        %v1587 = vand.u32 %v966, 4294901760
        %1588 = vmatpush1.msra.mxu0 %v1587
        %1589 = vmatprep.subr.mxu0 0.0
        %v1590 = vand.u32 %v967, 4294901760
        %1591 = vmatpush1.msra.mxu0 %v1590
        %1592 = vmatprep.subr.mxu0 0.0
        %v1593 = vand.u32 %v968, 4294901760
        %1594 = vmatpush1.msra.mxu0 %v1593
        %1595 = vmatprep.subr.mxu0 0.0
        %v1596 = vand.u32 %v969, 4294901760
        %1597 = vmatpush1.msra.mxu0 %v1596
        %1598 = vmatprep.subr.mxu0 0.0
        %v1599 = vand.u32 %v970, 4294901760
        %1600 = vmatpush1.msra.mxu0 %v1599
        %1601 = vmatprep.subr.mxu0 0.0
        %v1602 = vand.u32 %v971, 4294901760
        %1603 = vmatpush1.msra.mxu0 %v1602
        %1604 = vmatprep.subr.mxu0 0.0
        %v1605 = vand.u32 %v972, 4294901760
        %1606 = vmatpush1.msra.mxu0 %v1605
        %1607 = vmatprep.subr.mxu0 0.0
        %v1608 = vand.u32 %v973, 4294901760
        %1609 = vmatpush1.msra.mxu0 %v1608
        %1610 = vmatprep.subr.mxu0 0.0
        %v1611 = vand.u32 %v974, 4294901760
        %1612 = vmatpush1.msra.mxu0 %v1611
        %1613 = vmatprep.subr.mxu0 0.0
        %v1614 = vand.u32 %v975, 4294901760
        %1615 = vmatpush1.msra.mxu0 %v1614
        %1616 = vmatprep.subr.mxu0 0.0
        %v1617 = vand.u32 %v976, 4294901760
        %1618 = vmatpush1.msra.mxu0 %v1617
        %1619 = vmatprep.subr.mxu0 0.0
        %v1620 = vand.u32 %v977, 4294901760
        %1621 = vmatpush1.msra.mxu0 %v1620
        %1622 = vmatprep.subr.mxu0 0.0
        %v1623 = vand.u32 %v978, 4294901760
        %1624 = vmatpush1.msra.mxu0 %v1623
        %1625 = vmatprep.subr.mxu0 0.0
        %1626 = vmatpush1.msra.mxu0 0.0
        %1627 = vmatprep.subr.mxu0 0.0
        %1628 = vmatpush1.msra.mxu0 0.0
        %1629 = vmatprep.subr.mxu0 0.0
        %1630 = vmatpush1.msra.mxu0 0.0
        %1631 = vmatprep.subr.mxu0 0.0
        %1632 = vmatpush1.msra.mxu0 0.0
        %1633 = vmatprep.subr.mxu0 0.0
        %1634 = vmatpush1.msra.mxu0 0.0
        %1635 = vmatprep.subr.mxu0 0.0
        %1636 = vmatpush1.msra.mxu0 0.0
        %1637 = vmatprep.subr.mxu0 0.0
        %1638 = vmatpush1.msra.mxu0 0.0
        %1639 = vmatprep.subr.mxu0 0.0
        %1640 = vmatpush1.msra.mxu0 0.0
        %1641 = vmatprep.subr.mxu0 0.0
        %1642 = vmatpush1.msra.mxu0 0.0
        %1643 = vmatprep.subr.mxu0 0.0
        %1644 = vmatpush1.msra.mxu0 0.0
        %1645 = vmatprep.subr.mxu0 0.0
        %1646 = vmatpush1.msra.mxu0 0.0
        %1647 = vmatprep.subr.mxu0 0.0
        %1648 = vmatpush1.msra.mxu0 0.0
        %1649 = vmatprep.subr.mxu0 0.0
        %1650 = vmatpush1.msra.mxu0 0.0
        %1651 = vmatprep.subr.mxu0 0.0
        %1652 = vmatpush1.msra.mxu0 0.0
        %1653 = vmatprep.subr.mxu0 0.0
        %1654 = vmatpush1.msra.mxu0 0.0
        %1655 = vmatprep.subr.mxu0 0.0
        %1656 = vmatpush1.msra.mxu0 0.0
        %1657 = vmatprep.mubr.f32.mxu0 0.0
        %v1658 = vand.u32 %v961, 4294901760
        %1659 = vmatmul.mubr.f32.gmra.mrb[0].mxu0 %v1658
        %v1660 = vpop.f32.mrb[0].mxu0
        %v1661 = vadd.f32 %v1568, %v1660
        %v1662 = vpop.f32.mrb[0].mxu0
        %1663 = vmatprep.mubr.f32.mxu0 0.0
        %v1664 = vand.u32 %v962, 4294901760
        %1665 = vmatmul.mubr.f32.gmra.mrb[0].mxu0 %v1664
        %v1666 = vpop.f32.mrb[0].mxu0
        %v1667 = vadd.f32 %v1574, %v1666
        %v1668 = vpop.f32.mrb[0].mxu0
        %1669 = vdwg.mxu0
        %v1670 = vmul.f32 %v1661, 0.01
        %v1671 = vmul.f32 %v1667, 0.01
        %v1672 = vmax.f32 %v1661, %v1670
        %v1673 = vmax.f32 %v1667, %v1671
        %v1674 = vld [vmem:[%s5] sm:$0xff]
        %v1675 = vld [vmem:[%s5 + $0x8] sm:$0xff]
        %v1676 = vld [vmem:[%s5 + $0x10] sm:$0xff]
        %v1677 = vld [vmem:[%s5 + $0x18] sm:$0xff]
        %v1678 = vld [vmem:[%s5 + $0x20] sm:$0xff]
        %v1679 = vld [vmem:[%s5 + $0x28] sm:$0xff]
        %v1680 = vld [vmem:[%s5 + $0x30] sm:$0xff]
        %v1681 = vld [vmem:[%s5 + $0x38] sm:$0xff]
        %v1682 = vld [vmem:[%s5 + $0x40] sm:$0xff]
        %v1683 = vld [vmem:[%s5 + $0x48] sm:$0xff]
        %v1684 = vld [vmem:[%s5 + $0x50] sm:$0xff]
        %v1685 = vld [vmem:[%s5 + $0x58] sm:$0xff]
        %v1686 = vld [vmem:[%s5 + $0x60] sm:$0xff]
        %v1687 = vld [vmem:[%s5 + $0x68] sm:$0xff]
        %v1688 = vld [vmem:[%s5 + $0x70] sm:$0xff]
        %v1689 = vld [vmem:[%s5 + $0x78] sm:$0xff]
        %v1690 = vld [vmem:[%s6] sm:$0x1]
        %v1692 = vlaneseq
        %v1693 = vshrl.u32 %v1692, 7
        %v1694 = vsub.s32 0, %v1693
        %v1695 = vrot.slane %v1690, %v1694
        %1697 = vmatprep.subr.mxu0 0.0
        %v1698 = vand.u32 %v1674, 4294901760
        %1699 = vmatpush1.msra.mxu0 %v1698
        %1700 = vmatprep.subr.mxu0 0.0
        %v1701 = vand.u32 %v1675, 4294901760
        %1702 = vmatpush1.msra.mxu0 %v1701
        %1703 = vmatprep.subr.mxu0 0.0
        %v1704 = vand.u32 %v1676, 4294901760
        %1705 = vmatpush1.msra.mxu0 %v1704
        %1706 = vmatprep.subr.mxu0 0.0
        %v1707 = vand.u32 %v1677, 4294901760
        %1708 = vmatpush1.msra.mxu0 %v1707
        %1709 = vmatprep.subr.mxu0 0.0
        %v1710 = vand.u32 %v1678, 4294901760
        %1711 = vmatpush1.msra.mxu0 %v1710
        %1712 = vmatprep.subr.mxu0 0.0
        %v1713 = vand.u32 %v1679, 4294901760
        %1714 = vmatpush1.msra.mxu0 %v1713
        %1715 = vmatprep.subr.mxu0 0.0
        %v1716 = vand.u32 %v1680, 4294901760
        %1717 = vmatpush1.msra.mxu0 %v1716
        %1718 = vmatprep.subr.mxu0 0.0
        %v1719 = vand.u32 %v1681, 4294901760
        %1720 = vmatpush1.msra.mxu0 %v1719
        %1721 = vmatprep.subr.mxu0 0.0
        %v1722 = vand.u32 %v1682, 4294901760
        %1723 = vmatpush1.msra.mxu0 %v1722
        %1724 = vmatprep.subr.mxu0 0.0
        %v1725 = vand.u32 %v1683, 4294901760
        %1726 = vmatpush1.msra.mxu0 %v1725
        %1727 = vmatprep.subr.mxu0 0.0
        %v1728 = vand.u32 %v1684, 4294901760
        %1729 = vmatpush1.msra.mxu0 %v1728
        %1730 = vmatprep.subr.mxu0 0.0
        %v1731 = vand.u32 %v1685, 4294901760
        %1732 = vmatpush1.msra.mxu0 %v1731
        %1733 = vmatprep.subr.mxu0 0.0
        %v1734 = vand.u32 %v1686, 4294901760
        %1735 = vmatpush1.msra.mxu0 %v1734
        %1736 = vmatprep.subr.mxu0 0.0
        %v1737 = vand.u32 %v1687, 4294901760
        %1738 = vmatpush1.msra.mxu0 %v1737
        %1739 = vmatprep.subr.mxu0 0.0
        %v1740 = vand.u32 %v1688, 4294901760
        %1741 = vmatpush1.msra.mxu0 %v1740
        %1742 = vmatprep.subr.mxu0 0.0
        %v1743 = vand.u32 %v1689, 4294901760
        %1744 = vmatpush1.msra.mxu0 %v1743
        %1745 = vmatprep.subr.mxu0 0.0
        %1746 = vmatpush1.msra.mxu0 0.0
        %1747 = vmatprep.subr.mxu0 0.0
        %1748 = vmatpush1.msra.mxu0 0.0
        %1749 = vmatprep.subr.mxu0 0.0
        %1750 = vmatpush1.msra.mxu0 0.0
        %1751 = vmatprep.subr.mxu0 0.0
        %1752 = vmatpush1.msra.mxu0 0.0
        %1753 = vmatprep.subr.mxu0 0.0
        %1754 = vmatpush1.msra.mxu0 0.0
        %1755 = vmatprep.subr.mxu0 0.0
        %1756 = vmatpush1.msra.mxu0 0.0
        %1757 = vmatprep.subr.mxu0 0.0
        %1758 = vmatpush1.msra.mxu0 0.0
        %1759 = vmatprep.subr.mxu0 0.0
        %1760 = vmatpush1.msra.mxu0 0.0
        %1761 = vmatprep.subr.mxu0 0.0
        %1762 = vmatpush1.msra.mxu0 0.0
        %1763 = vmatprep.subr.mxu0 0.0
        %1764 = vmatpush1.msra.mxu0 0.0
        %1765 = vmatprep.subr.mxu0 0.0
        %1766 = vmatpush1.msra.mxu0 0.0
        %1767 = vmatprep.subr.mxu0 0.0
        %1768 = vmatpush1.msra.mxu0 0.0
        %1769 = vmatprep.subr.mxu0 0.0
        %1770 = vmatpush1.msra.mxu0 0.0
        %1771 = vmatprep.subr.mxu0 0.0
        %1772 = vmatpush1.msra.mxu0 0.0
        %1773 = vmatprep.subr.mxu0 0.0
        %1774 = vmatpush1.msra.mxu0 0.0
        %1775 = vmatprep.subr.mxu0 0.0
        %1776 = vmatpush1.msra.mxu0 0.0
        %1777 = vmatprep.mubr.f32.mxu0 0.0
        %v1778 = vand.u32 %v1672, 4294901760
        %v1779 = vsub.f32 %v1672, %v1778
        %v1780 = vand.u32 %v1779, 4294901760
        %v1781 = vsub.f32 %v1779, %v1780
        %v1782 = vand.u32 %v1781, 4294901760
        %1783 = vmatmul.mubr.f32.gmra.mrb[0].mxu0 %v1782
        %v1784 = vpop.f32.mrb[0].mxu0
        %v1785 = vadd.f32 %v1695, %v1784
        %v1786 = vpop.f32.mrb[0].mxu0
        %1787 = vmatprep.mubr.f32.mxu0 0.0
        %v1788 = vand.u32 %v1673, 4294901760
        %v1789 = vsub.f32 %v1673, %v1788
        %v1790 = vand.u32 %v1789, 4294901760
        %v1791 = vsub.f32 %v1789, %v1790
        %v1792 = vand.u32 %v1791, 4294901760
        %1793 = vmatmul.mubr.f32.gmra.mrb[0].mxu0 %v1792
        %v1794 = vpop.f32.mrb[0].mxu0
        %v1795 = vadd.f32 %v1695, %v1794
        %v1796 = vpop.f32.mrb[0].mxu0
        %1797 = vdwg.mxu0
        %1798 = vmatprep.subr.mxu0 0.0
        %v1799 = vand.u32 %v1674, 4294901760
        %v1800 = vsub.f32 %v1674, %v1799
        %v1801 = vand.u32 %v1800, 4294901760
        %v1802 = vsub.f32 %v1800, %v1801
        %v1803 = vand.u32 %v1802, 4294901760
        %1804 = vmatpush1.msra.mxu0 %v1803
        %1805 = vmatprep.subr.mxu0 0.0
        %v1806 = vand.u32 %v1675, 4294901760
        %v1807 = vsub.f32 %v1675, %v1806
        %v1808 = vand.u32 %v1807, 4294901760
        %v1809 = vsub.f32 %v1807, %v1808
        %v1810 = vand.u32 %v1809, 4294901760
        %1811 = vmatpush1.msra.mxu0 %v1810
        %1812 = vmatprep.subr.mxu0 0.0
        %v1813 = vand.u32 %v1676, 4294901760
        %v1814 = vsub.f32 %v1676, %v1813
        %v1815 = vand.u32 %v1814, 4294901760
        %v1816 = vsub.f32 %v1814, %v1815
        %v1817 = vand.u32 %v1816, 4294901760
        %1818 = vmatpush1.msra.mxu0 %v1817
        %1819 = vmatprep.subr.mxu0 0.0
        %v1820 = vand.u32 %v1677, 4294901760
        %v1821 = vsub.f32 %v1677, %v1820
        %v1822 = vand.u32 %v1821, 4294901760
        %v1823 = vsub.f32 %v1821, %v1822
        %v1824 = vand.u32 %v1823, 4294901760
        %1825 = vmatpush1.msra.mxu0 %v1824
        %1826 = vmatprep.subr.mxu0 0.0
        %v1827 = vand.u32 %v1678, 4294901760
        %v1828 = vsub.f32 %v1678, %v1827
        %v1829 = vand.u32 %v1828, 4294901760
        %v1830 = vsub.f32 %v1828, %v1829
        %v1831 = vand.u32 %v1830, 4294901760
        %1832 = vmatpush1.msra.mxu0 %v1831
        %1833 = vmatprep.subr.mxu0 0.0
        %v1834 = vand.u32 %v1679, 4294901760
        %v1835 = vsub.f32 %v1679, %v1834
        %v1836 = vand.u32 %v1835, 4294901760
        %v1837 = vsub.f32 %v1835, %v1836
        %v1838 = vand.u32 %v1837, 4294901760
        %1839 = vmatpush1.msra.mxu0 %v1838
        %1840 = vmatprep.subr.mxu0 0.0
        %v1841 = vand.u32 %v1680, 4294901760
        %v1842 = vsub.f32 %v1680, %v1841
        %v1843 = vand.u32 %v1842, 4294901760
        %v1844 = vsub.f32 %v1842, %v1843
        %v1845 = vand.u32 %v1844, 4294901760
        %1846 = vmatpush1.msra.mxu0 %v1845
        %1847 = vmatprep.subr.mxu0 0.0
        %v1848 = vand.u32 %v1681, 4294901760
        %v1849 = vsub.f32 %v1681, %v1848
        %v1850 = vand.u32 %v1849, 4294901760
        %v1851 = vsub.f32 %v1849, %v1850
        %v1852 = vand.u32 %v1851, 4294901760
        %1853 = vmatpush1.msra.mxu0 %v1852
        %1854 = vmatprep.subr.mxu0 0.0
        %v1855 = vand.u32 %v1682, 4294901760
        %v1856 = vsub.f32 %v1682, %v1855
        %v1857 = vand.u32 %v1856, 4294901760
        %v1858 = vsub.f32 %v1856, %v1857
        %v1859 = vand.u32 %v1858, 4294901760
        %1860 = vmatpush1.msra.mxu0 %v1859
        %1861 = vmatprep.subr.mxu0 0.0
        %v1862 = vand.u32 %v1683, 4294901760
        %v1863 = vsub.f32 %v1683, %v1862
        %v1864 = vand.u32 %v1863, 4294901760
        %v1865 = vsub.f32 %v1863, %v1864
        %v1866 = vand.u32 %v1865, 4294901760
        %1867 = vmatpush1.msra.mxu0 %v1866
        %1868 = vmatprep.subr.mxu0 0.0
        %v1869 = vand.u32 %v1684, 4294901760
        %v1870 = vsub.f32 %v1684, %v1869
        %v1871 = vand.u32 %v1870, 4294901760
        %v1872 = vsub.f32 %v1870, %v1871
        %v1873 = vand.u32 %v1872, 4294901760
        %1874 = vmatpush1.msra.mxu0 %v1873
        %1875 = vmatprep.subr.mxu0 0.0
        %v1876 = vand.u32 %v1685, 4294901760
        %v1877 = vsub.f32 %v1685, %v1876
        %v1878 = vand.u32 %v1877, 4294901760
        %v1879 = vsub.f32 %v1877, %v1878
        %v1880 = vand.u32 %v1879, 4294901760
        %1881 = vmatpush1.msra.mxu0 %v1880
        %1882 = vmatprep.subr.mxu0 0.0
        %v1883 = vand.u32 %v1686, 4294901760
        %v1884 = vsub.f32 %v1686, %v1883
        %v1885 = vand.u32 %v1884, 4294901760
        %v1886 = vsub.f32 %v1884, %v1885
        %v1887 = vand.u32 %v1886, 4294901760
        %1888 = vmatpush1.msra.mxu0 %v1887
        %1889 = vmatprep.subr.mxu0 0.0
        %v1890 = vand.u32 %v1687, 4294901760
        %v1891 = vsub.f32 %v1687, %v1890
        %v1892 = vand.u32 %v1891, 4294901760
        %v1893 = vsub.f32 %v1891, %v1892
        %v1894 = vand.u32 %v1893, 4294901760
        %1895 = vmatpush1.msra.mxu0 %v1894
        %1896 = vmatprep.subr.mxu0 0.0
        %v1897 = vand.u32 %v1688, 4294901760
        %v1898 = vsub.f32 %v1688, %v1897
        %v1899 = vand.u32 %v1898, 4294901760
        %v1900 = vsub.f32 %v1898, %v1899
        %v1901 = vand.u32 %v1900, 4294901760
        %1902 = vmatpush1.msra.mxu0 %v1901
        %1903 = vmatprep.subr.mxu0 0.0
        %v1904 = vand.u32 %v1689, 4294901760
        %v1905 = vsub.f32 %v1689, %v1904
        %v1906 = vand.u32 %v1905, 4294901760
        %v1907 = vsub.f32 %v1905, %v1906
        %v1908 = vand.u32 %v1907, 4294901760
        %1909 = vmatpush1.msra.mxu0 %v1908
        %1910 = vmatprep.subr.mxu0 0.0
        %1911 = vmatpush1.msra.mxu0 0.0
        %1912 = vmatprep.subr.mxu0 0.0
        %1913 = vmatpush1.msra.mxu0 0.0
        %1914 = vmatprep.subr.mxu0 0.0
        %1915 = vmatpush1.msra.mxu0 0.0
        %1916 = vmatprep.subr.mxu0 0.0
        %1917 = vmatpush1.msra.mxu0 0.0
        %1918 = vmatprep.subr.mxu0 0.0
        %1919 = vmatpush1.msra.mxu0 0.0
        %1920 = vmatprep.subr.mxu0 0.0
        %1921 = vmatpush1.msra.mxu0 0.0
        %1922 = vmatprep.subr.mxu0 0.0
        %1923 = vmatpush1.msra.mxu0 0.0
        %1924 = vmatprep.subr.mxu0 0.0
        %1925 = vmatpush1.msra.mxu0 0.0
        %1926 = vmatprep.subr.mxu0 0.0
        %1927 = vmatpush1.msra.mxu0 0.0
        %1928 = vmatprep.subr.mxu0 0.0
        %1929 = vmatpush1.msra.mxu0 0.0
        %1930 = vmatprep.subr.mxu0 0.0
        %1931 = vmatpush1.msra.mxu0 0.0
        %1932 = vmatprep.subr.mxu0 0.0
        %1933 = vmatpush1.msra.mxu0 0.0
        %1934 = vmatprep.subr.mxu0 0.0
        %1935 = vmatpush1.msra.mxu0 0.0
        %1936 = vmatprep.subr.mxu0 0.0
        %1937 = vmatpush1.msra.mxu0 0.0
        %1938 = vmatprep.subr.mxu0 0.0
        %1939 = vmatpush1.msra.mxu0 0.0
        %1940 = vmatprep.subr.mxu0 0.0
        %1941 = vmatpush1.msra.mxu0 0.0
        %1942 = vmatprep.mubr.f32.mxu0 0.0
        %v1943 = vand.u32 %v1672, 4294901760
        %1944 = vmatmul.mubr.f32.gmra.mrb[0].mxu0 %v1943
        %v1945 = vpop.f32.mrb[0].mxu0
        %v1946 = vadd.f32 %v1785, %v1945
        %v1947 = vpop.f32.mrb[0].mxu0
        %1948 = vmatprep.mubr.f32.mxu0 0.0
        %v1949 = vand.u32 %v1673, 4294901760
        %1950 = vmatmul.mubr.f32.gmra.mrb[0].mxu0 %v1949
        %v1951 = vpop.f32.mrb[0].mxu0
        %v1952 = vadd.f32 %v1795, %v1951
        %v1953 = vpop.f32.mrb[0].mxu0
        %1954 = vdwg.mxu0
        %1955 = vmatprep.subr.mxu0 0.0
        %v1956 = vand.u32 %v1674, 4294901760
        %v1957 = vsub.f32 %v1674, %v1956
        %1958 = vmatpush1.msra.mxu0 %v1957
        %1959 = vmatprep.subr.mxu0 0.0
        %v1960 = vand.u32 %v1675, 4294901760
        %v1961 = vsub.f32 %v1675, %v1960
        %1962 = vmatpush1.msra.mxu0 %v1961
        %1963 = vmatprep.subr.mxu0 0.0
        %v1964 = vand.u32 %v1676, 4294901760
        %v1965 = vsub.f32 %v1676, %v1964
        %1966 = vmatpush1.msra.mxu0 %v1965
        %1967 = vmatprep.subr.mxu0 0.0
        %v1968 = vand.u32 %v1677, 4294901760
        %v1969 = vsub.f32 %v1677, %v1968
        %1970 = vmatpush1.msra.mxu0 %v1969
        %1971 = vmatprep.subr.mxu0 0.0
        %v1972 = vand.u32 %v1678, 4294901760
        %v1973 = vsub.f32 %v1678, %v1972
        %1974 = vmatpush1.msra.mxu0 %v1973
        %1975 = vmatprep.subr.mxu0 0.0
        %v1976 = vand.u32 %v1679, 4294901760
        %v1977 = vsub.f32 %v1679, %v1976
        %1978 = vmatpush1.msra.mxu0 %v1977
        %1979 = vmatprep.subr.mxu0 0.0
        %v1980 = vand.u32 %v1680, 4294901760
        %v1981 = vsub.f32 %v1680, %v1980
        %1982 = vmatpush1.msra.mxu0 %v1981
        %1983 = vmatprep.subr.mxu0 0.0
        %v1984 = vand.u32 %v1681, 4294901760
        %v1985 = vsub.f32 %v1681, %v1984
        %1986 = vmatpush1.msra.mxu0 %v1985
        %1987 = vmatprep.subr.mxu0 0.0
        %v1988 = vand.u32 %v1682, 4294901760
        %v1989 = vsub.f32 %v1682, %v1988
        %1990 = vmatpush1.msra.mxu0 %v1989
        %1991 = vmatprep.subr.mxu0 0.0
        %v1992 = vand.u32 %v1683, 4294901760
        %v1993 = vsub.f32 %v1683, %v1992
        %1994 = vmatpush1.msra.mxu0 %v1993
        %1995 = vmatprep.subr.mxu0 0.0
        %v1996 = vand.u32 %v1684, 4294901760
        %v1997 = vsub.f32 %v1684, %v1996
        %1998 = vmatpush1.msra.mxu0 %v1997
        %1999 = vmatprep.subr.mxu0 0.0
        %v2000 = vand.u32 %v1685, 4294901760
        %v2001 = vsub.f32 %v1685, %v2000
        %2002 = vmatpush1.msra.mxu0 %v2001
        %2003 = vmatprep.subr.mxu0 0.0
        %v2004 = vand.u32 %v1686, 4294901760
        %v2005 = vsub.f32 %v1686, %v2004
        %2006 = vmatpush1.msra.mxu0 %v2005
        %2007 = vmatprep.subr.mxu0 0.0
        %v2008 = vand.u32 %v1687, 4294901760
        %v2009 = vsub.f32 %v1687, %v2008
        %2010 = vmatpush1.msra.mxu0 %v2009
        %2011 = vmatprep.subr.mxu0 0.0
        %v2012 = vand.u32 %v1688, 4294901760
        %v2013 = vsub.f32 %v1688, %v2012
        %2014 = vmatpush1.msra.mxu0 %v2013
        %2015 = vmatprep.subr.mxu0 0.0
        %v2016 = vand.u32 %v1689, 4294901760
        %v2017 = vsub.f32 %v1689, %v2016
        %2018 = vmatpush1.msra.mxu0 %v2017
        %2019 = vmatprep.subr.mxu0 0.0
        %2020 = vmatpush1.msra.mxu0 0.0
        %2021 = vmatprep.subr.mxu0 0.0
        %2022 = vmatpush1.msra.mxu0 0.0
        %2023 = vmatprep.subr.mxu0 0.0
        %2024 = vmatpush1.msra.mxu0 0.0
        %2025 = vmatprep.subr.mxu0 0.0
        %2026 = vmatpush1.msra.mxu0 0.0
        %2027 = vmatprep.subr.mxu0 0.0
        %2028 = vmatpush1.msra.mxu0 0.0
        %2029 = vmatprep.subr.mxu0 0.0
        %2030 = vmatpush1.msra.mxu0 0.0
        %2031 = vmatprep.subr.mxu0 0.0
        %2032 = vmatpush1.msra.mxu0 0.0
        %2033 = vmatprep.subr.mxu0 0.0
        %2034 = vmatpush1.msra.mxu0 0.0
        %2035 = vmatprep.subr.mxu0 0.0
        %2036 = vmatpush1.msra.mxu0 0.0
        %2037 = vmatprep.subr.mxu0 0.0
        %2038 = vmatpush1.msra.mxu0 0.0
        %2039 = vmatprep.subr.mxu0 0.0
        %2040 = vmatpush1.msra.mxu0 0.0
        %2041 = vmatprep.subr.mxu0 0.0
        %2042 = vmatpush1.msra.mxu0 0.0
        %2043 = vmatprep.subr.mxu0 0.0
        %2044 = vmatpush1.msra.mxu0 0.0
        %2045 = vmatprep.subr.mxu0 0.0
        %2046 = vmatpush1.msra.mxu0 0.0
        %2047 = vmatprep.subr.mxu0 0.0
        %2048 = vmatpush1.msra.mxu0 0.0
        %2049 = vmatprep.subr.mxu0 0.0
        %2050 = vmatpush1.msra.mxu0 0.0
        %2051 = vmatprep.mubr.f32.mxu0 0.0
        %v2052 = vand.u32 %v1672, 4294901760
        %v2053 = vsub.f32 %v1672, %v2052
        %2054 = vmatmul.mubr.f32.gmra.mrb[0].mxu0 %v2053
        %v2055 = vpop.f32.mrb[0].mxu0
        %v2056 = vadd.f32 %v1946, %v2055
        %v2057 = vpop.f32.mrb[0].mxu0
        %2058 = vmatprep.mubr.f32.mxu0 0.0
        %v2059 = vand.u32 %v1673, 4294901760
        %v2060 = vsub.f32 %v1673, %v2059
        %2061 = vmatmul.mubr.f32.gmra.mrb[0].mxu0 %v2060
        %v2062 = vpop.f32.mrb[0].mxu0
        %v2063 = vadd.f32 %v1952, %v2062
        %v2064 = vpop.f32.mrb[0].mxu0
        %2065 = vdwg.mxu0
        %2066 = vmatprep.subr.mxu0 0.0
        %v2067 = vand.u32 %v1674, 4294901760
        %2068 = vmatpush1.msra.mxu0 %v2067
        %2069 = vmatprep.subr.mxu0 0.0
        %v2070 = vand.u32 %v1675, 4294901760
        %2071 = vmatpush1.msra.mxu0 %v2070
        %2072 = vmatprep.subr.mxu0 0.0
        %v2073 = vand.u32 %v1676, 4294901760
        %2074 = vmatpush1.msra.mxu0 %v2073
        %2075 = vmatprep.subr.mxu0 0.0
        %v2076 = vand.u32 %v1677, 4294901760
        %2077 = vmatpush1.msra.mxu0 %v2076
        %2078 = vmatprep.subr.mxu0 0.0
        %v2079 = vand.u32 %v1678, 4294901760
        %2080 = vmatpush1.msra.mxu0 %v2079
        %2081 = vmatprep.subr.mxu0 0.0
        %v2082 = vand.u32 %v1679, 4294901760
        %2083 = vmatpush1.msra.mxu0 %v2082
        %2084 = vmatprep.subr.mxu0 0.0
        %v2085 = vand.u32 %v1680, 4294901760
        %2086 = vmatpush1.msra.mxu0 %v2085
        %2087 = vmatprep.subr.mxu0 0.0
        %v2088 = vand.u32 %v1681, 4294901760
        %2089 = vmatpush1.msra.mxu0 %v2088
        %2090 = vmatprep.subr.mxu0 0.0
        %v2091 = vand.u32 %v1682, 4294901760
        %2092 = vmatpush1.msra.mxu0 %v2091
        %2093 = vmatprep.subr.mxu0 0.0
        %v2094 = vand.u32 %v1683, 4294901760
        %2095 = vmatpush1.msra.mxu0 %v2094
        %2096 = vmatprep.subr.mxu0 0.0
        %v2097 = vand.u32 %v1684, 4294901760
        %2098 = vmatpush1.msra.mxu0 %v2097
        %2099 = vmatprep.subr.mxu0 0.0
        %v2100 = vand.u32 %v1685, 4294901760
        %2101 = vmatpush1.msra.mxu0 %v2100
        %2102 = vmatprep.subr.mxu0 0.0
        %v2103 = vand.u32 %v1686, 4294901760
        %2104 = vmatpush1.msra.mxu0 %v2103
        %2105 = vmatprep.subr.mxu0 0.0
        %v2106 = vand.u32 %v1687, 4294901760
        %2107 = vmatpush1.msra.mxu0 %v2106
        %2108 = vmatprep.subr.mxu0 0.0
        %v2109 = vand.u32 %v1688, 4294901760
        %2110 = vmatpush1.msra.mxu0 %v2109
        %2111 = vmatprep.subr.mxu0 0.0
        %v2112 = vand.u32 %v1689, 4294901760
        %2113 = vmatpush1.msra.mxu0 %v2112
        %2114 = vmatprep.subr.mxu0 0.0
        %2115 = vmatpush1.msra.mxu0 0.0
        %2116 = vmatprep.subr.mxu0 0.0
        %2117 = vmatpush1.msra.mxu0 0.0
        %2118 = vmatprep.subr.mxu0 0.0
        %2119 = vmatpush1.msra.mxu0 0.0
        %2120 = vmatprep.subr.mxu0 0.0
        %2121 = vmatpush1.msra.mxu0 0.0
        %2122 = vmatprep.subr.mxu0 0.0
        %2123 = vmatpush1.msra.mxu0 0.0
        %2124 = vmatprep.subr.mxu0 0.0
        %2125 = vmatpush1.msra.mxu0 0.0
        %2126 = vmatprep.subr.mxu0 0.0
        %2127 = vmatpush1.msra.mxu0 0.0
        %2128 = vmatprep.subr.mxu0 0.0
        %2129 = vmatpush1.msra.mxu0 0.0
        %2130 = vmatprep.subr.mxu0 0.0
        %2131 = vmatpush1.msra.mxu0 0.0
        %2132 = vmatprep.subr.mxu0 0.0
        %2133 = vmatpush1.msra.mxu0 0.0
        %2134 = vmatprep.subr.mxu0 0.0
        %2135 = vmatpush1.msra.mxu0 0.0
        %2136 = vmatprep.subr.mxu0 0.0
        %2137 = vmatpush1.msra.mxu0 0.0
        %2138 = vmatprep.subr.mxu0 0.0
        %2139 = vmatpush1.msra.mxu0 0.0
        %2140 = vmatprep.subr.mxu0 0.0
        %2141 = vmatpush1.msra.mxu0 0.0
        %2142 = vmatprep.subr.mxu0 0.0
        %2143 = vmatpush1.msra.mxu0 0.0
        %2144 = vmatprep.subr.mxu0 0.0
        %2145 = vmatpush1.msra.mxu0 0.0
        %2146 = vmatprep.mubr.f32.mxu0 0.0
        %v2147 = vand.u32 %v1672, 4294901760
        %v2148 = vsub.f32 %v1672, %v2147
        %v2149 = vand.u32 %v2148, 4294901760
        %2150 = vmatmul.mubr.f32.gmra.mrb[0].mxu0 %v2149
        %v2151 = vpop.f32.mrb[0].mxu0
        %v2152 = vadd.f32 %v2056, %v2151
        %v2153 = vpop.f32.mrb[0].mxu0
        %2154 = vmatprep.mubr.f32.mxu0 0.0
        %v2155 = vand.u32 %v1673, 4294901760
        %v2156 = vsub.f32 %v1673, %v2155
        %v2157 = vand.u32 %v2156, 4294901760
        %2158 = vmatmul.mubr.f32.gmra.mrb[0].mxu0 %v2157
        %v2159 = vpop.f32.mrb[0].mxu0
        %v2160 = vadd.f32 %v2063, %v2159
        %v2161 = vpop.f32.mrb[0].mxu0
        %2162 = vdwg.mxu0
        %2163 = vmatprep.subr.mxu0 0.0
        %v2164 = vand.u32 %v1674, 4294901760
        %v2165 = vsub.f32 %v1674, %v2164
        %v2166 = vand.u32 %v2165, 4294901760
        %2167 = vmatpush1.msra.mxu0 %v2166
        %2168 = vmatprep.subr.mxu0 0.0
        %v2169 = vand.u32 %v1675, 4294901760
        %v2170 = vsub.f32 %v1675, %v2169
        %v2171 = vand.u32 %v2170, 4294901760
        %2172 = vmatpush1.msra.mxu0 %v2171
        %2173 = vmatprep.subr.mxu0 0.0
        %v2174 = vand.u32 %v1676, 4294901760
        %v2175 = vsub.f32 %v1676, %v2174
        %v2176 = vand.u32 %v2175, 4294901760
        %2177 = vmatpush1.msra.mxu0 %v2176
        %2178 = vmatprep.subr.mxu0 0.0
        %v2179 = vand.u32 %v1677, 4294901760
        %v2180 = vsub.f32 %v1677, %v2179
        %v2181 = vand.u32 %v2180, 4294901760
        %2182 = vmatpush1.msra.mxu0 %v2181
        %2183 = vmatprep.subr.mxu0 0.0
        %v2184 = vand.u32 %v1678, 4294901760
        %v2185 = vsub.f32 %v1678, %v2184
        %v2186 = vand.u32 %v2185, 4294901760
        %2187 = vmatpush1.msra.mxu0 %v2186
        %2188 = vmatprep.subr.mxu0 0.0
        %v2189 = vand.u32 %v1679, 4294901760
        %v2190 = vsub.f32 %v1679, %v2189
        %v2191 = vand.u32 %v2190, 4294901760
        %2192 = vmatpush1.msra.mxu0 %v2191
        %2193 = vmatprep.subr.mxu0 0.0
        %v2194 = vand.u32 %v1680, 4294901760
        %v2195 = vsub.f32 %v1680, %v2194
        %v2196 = vand.u32 %v2195, 4294901760
        %2197 = vmatpush1.msra.mxu0 %v2196
        %2198 = vmatprep.subr.mxu0 0.0
        %v2199 = vand.u32 %v1681, 4294901760
        %v2200 = vsub.f32 %v1681, %v2199
        %v2201 = vand.u32 %v2200, 4294901760
        %2202 = vmatpush1.msra.mxu0 %v2201
        %2203 = vmatprep.subr.mxu0 0.0
        %v2204 = vand.u32 %v1682, 4294901760
        %v2205 = vsub.f32 %v1682, %v2204
        %v2206 = vand.u32 %v2205, 4294901760
        %2207 = vmatpush1.msra.mxu0 %v2206
        %2208 = vmatprep.subr.mxu0 0.0
        %v2209 = vand.u32 %v1683, 4294901760
        %v2210 = vsub.f32 %v1683, %v2209
        %v2211 = vand.u32 %v2210, 4294901760
        %2212 = vmatpush1.msra.mxu0 %v2211
        %2213 = vmatprep.subr.mxu0 0.0
        %v2214 = vand.u32 %v1684, 4294901760
        %v2215 = vsub.f32 %v1684, %v2214
        %v2216 = vand.u32 %v2215, 4294901760
        %2217 = vmatpush1.msra.mxu0 %v2216
        %2218 = vmatprep.subr.mxu0 0.0
        %v2219 = vand.u32 %v1685, 4294901760
        %v2220 = vsub.f32 %v1685, %v2219
        %v2221 = vand.u32 %v2220, 4294901760
        %2222 = vmatpush1.msra.mxu0 %v2221
        %2223 = vmatprep.subr.mxu0 0.0
        %v2224 = vand.u32 %v1686, 4294901760
        %v2225 = vsub.f32 %v1686, %v2224
        %v2226 = vand.u32 %v2225, 4294901760
        %2227 = vmatpush1.msra.mxu0 %v2226
        %2228 = vmatprep.subr.mxu0 0.0
        %v2229 = vand.u32 %v1687, 4294901760
        %v2230 = vsub.f32 %v1687, %v2229
        %v2231 = vand.u32 %v2230, 4294901760
        %2232 = vmatpush1.msra.mxu0 %v2231
        %2233 = vmatprep.subr.mxu0 0.0
        %v2234 = vand.u32 %v1688, 4294901760
        %v2235 = vsub.f32 %v1688, %v2234
        %v2236 = vand.u32 %v2235, 4294901760
        %2237 = vmatpush1.msra.mxu0 %v2236
        %2238 = vmatprep.subr.mxu0 0.0
        %v2239 = vand.u32 %v1689, 4294901760
        %v2240 = vsub.f32 %v1689, %v2239
        %v2241 = vand.u32 %v2240, 4294901760
        %2242 = vmatpush1.msra.mxu0 %v2241
        %2243 = vmatprep.subr.mxu0 0.0
        %2244 = vmatpush1.msra.mxu0 0.0
        %2245 = vmatprep.subr.mxu0 0.0
        %2246 = vmatpush1.msra.mxu0 0.0
        %2247 = vmatprep.subr.mxu0 0.0
        %2248 = vmatpush1.msra.mxu0 0.0
        %2249 = vmatprep.subr.mxu0 0.0
        %2250 = vmatpush1.msra.mxu0 0.0
        %2251 = vmatprep.subr.mxu0 0.0
        %2252 = vmatpush1.msra.mxu0 0.0
        %2253 = vmatprep.subr.mxu0 0.0
        %2254 = vmatpush1.msra.mxu0 0.0
        %2255 = vmatprep.subr.mxu0 0.0
        %2256 = vmatpush1.msra.mxu0 0.0
        %2257 = vmatprep.subr.mxu0 0.0
        %2258 = vmatpush1.msra.mxu0 0.0
        %2259 = vmatprep.subr.mxu0 0.0
        %2260 = vmatpush1.msra.mxu0 0.0
        %2261 = vmatprep.subr.mxu0 0.0
        %2262 = vmatpush1.msra.mxu0 0.0
        %2263 = vmatprep.subr.mxu0 0.0
        %2264 = vmatpush1.msra.mxu0 0.0
        %2265 = vmatprep.subr.mxu0 0.0
        %2266 = vmatpush1.msra.mxu0 0.0
        %2267 = vmatprep.subr.mxu0 0.0
        %2268 = vmatpush1.msra.mxu0 0.0
        %2269 = vmatprep.subr.mxu0 0.0
        %2270 = vmatpush1.msra.mxu0 0.0
        %2271 = vmatprep.subr.mxu0 0.0
        %2272 = vmatpush1.msra.mxu0 0.0
        %2273 = vmatprep.subr.mxu0 0.0
        %2274 = vmatpush1.msra.mxu0 0.0
        %2275 = vmatprep.mubr.f32.mxu0 0.0
        %v2276 = vand.u32 %v1672, 4294901760
        %2277 = vmatmul.mubr.f32.gmra.mrb[0].mxu0 %v2276
        %v2278 = vpop.f32.mrb[0].mxu0
        %v2279 = vadd.f32 %v2152, %v2278
        %v2280 = vpop.f32.mrb[0].mxu0
        %2281 = vmatprep.mubr.f32.mxu0 0.0
        %v2282 = vand.u32 %v1673, 4294901760
        %2283 = vmatmul.mubr.f32.gmra.mrb[0].mxu0 %v2282
        %v2284 = vpop.f32.mrb[0].mxu0
        %v2285 = vadd.f32 %v2160, %v2284
        %v2286 = vpop.f32.mrb[0].mxu0
        %2287 = vdwg.mxu0
        %2288 = vmatprep.subr.mxu0 0.0
        %v2289 = vand.u32 %v1674, 4294901760
        %2290 = vmatpush1.msra.mxu0 %v2289
        %2291 = vmatprep.subr.mxu0 0.0
        %v2292 = vand.u32 %v1675, 4294901760
        %2293 = vmatpush1.msra.mxu0 %v2292
        %2294 = vmatprep.subr.mxu0 0.0
        %v2295 = vand.u32 %v1676, 4294901760
        %2296 = vmatpush1.msra.mxu0 %v2295
        %2297 = vmatprep.subr.mxu0 0.0
        %v2298 = vand.u32 %v1677, 4294901760
        %2299 = vmatpush1.msra.mxu0 %v2298
        %2300 = vmatprep.subr.mxu0 0.0
        %v2301 = vand.u32 %v1678, 4294901760
        %2302 = vmatpush1.msra.mxu0 %v2301
        %2303 = vmatprep.subr.mxu0 0.0
        %v2304 = vand.u32 %v1679, 4294901760
        %2305 = vmatpush1.msra.mxu0 %v2304
        %2306 = vmatprep.subr.mxu0 0.0
        %v2307 = vand.u32 %v1680, 4294901760
        %2308 = vmatpush1.msra.mxu0 %v2307
        %2309 = vmatprep.subr.mxu0 0.0
        %v2310 = vand.u32 %v1681, 4294901760
        %2311 = vmatpush1.msra.mxu0 %v2310
        %2312 = vmatprep.subr.mxu0 0.0
        %v2313 = vand.u32 %v1682, 4294901760
        %2314 = vmatpush1.msra.mxu0 %v2313
        %2315 = vmatprep.subr.mxu0 0.0
        %v2316 = vand.u32 %v1683, 4294901760
        %2317 = vmatpush1.msra.mxu0 %v2316
        %2318 = vmatprep.subr.mxu0 0.0
        %v2319 = vand.u32 %v1684, 4294901760
        %2320 = vmatpush1.msra.mxu0 %v2319
        %2321 = vmatprep.subr.mxu0 0.0
        %v2322 = vand.u32 %v1685, 4294901760
        %2323 = vmatpush1.msra.mxu0 %v2322
        %2324 = vmatprep.subr.mxu0 0.0
        %v2325 = vand.u32 %v1686, 4294901760
        %2326 = vmatpush1.msra.mxu0 %v2325
        %2327 = vmatprep.subr.mxu0 0.0
        %v2328 = vand.u32 %v1687, 4294901760
        %2329 = vmatpush1.msra.mxu0 %v2328
        %2330 = vmatprep.subr.mxu0 0.0
        %v2331 = vand.u32 %v1688, 4294901760
        %2332 = vmatpush1.msra.mxu0 %v2331
        %2333 = vmatprep.subr.mxu0 0.0
        %v2334 = vand.u32 %v1689, 4294901760
        %2335 = vmatpush1.msra.mxu0 %v2334
        %2336 = vmatprep.subr.mxu0 0.0
        %2337 = vmatpush1.msra.mxu0 0.0
        %2338 = vmatprep.subr.mxu0 0.0
        %2339 = vmatpush1.msra.mxu0 0.0
        %2340 = vmatprep.subr.mxu0 0.0
        %2341 = vmatpush1.msra.mxu0 0.0
        %2342 = vmatprep.subr.mxu0 0.0
        %2343 = vmatpush1.msra.mxu0 0.0
        %2344 = vmatprep.subr.mxu0 0.0
        %2345 = vmatpush1.msra.mxu0 0.0
        %2346 = vmatprep.subr.mxu0 0.0
        %2347 = vmatpush1.msra.mxu0 0.0
        %2348 = vmatprep.subr.mxu0 0.0
        %2349 = vmatpush1.msra.mxu0 0.0
        %2350 = vmatprep.subr.mxu0 0.0
        %2351 = vmatpush1.msra.mxu0 0.0
        %2352 = vmatprep.subr.mxu0 0.0
        %2353 = vmatpush1.msra.mxu0 0.0
        %2354 = vmatprep.subr.mxu0 0.0
        %2355 = vmatpush1.msra.mxu0 0.0
        %2356 = vmatprep.subr.mxu0 0.0
        %2357 = vmatpush1.msra.mxu0 0.0
        %2358 = vmatprep.subr.mxu0 0.0
        %2359 = vmatpush1.msra.mxu0 0.0
        %2360 = vmatprep.subr.mxu0 0.0
        %2361 = vmatpush1.msra.mxu0 0.0
        %2362 = vmatprep.subr.mxu0 0.0
        %2363 = vmatpush1.msra.mxu0 0.0
        %2364 = vmatprep.subr.mxu0 0.0
        %2365 = vmatpush1.msra.mxu0 0.0
        %2366 = vmatprep.subr.mxu0 0.0
        %2367 = vmatpush1.msra.mxu0 0.0
        %2368 = vmatprep.mubr.f32.mxu0 0.0
        %v2369 = vand.u32 %v1672, 4294901760
        %2370 = vmatmul.mubr.f32.gmra.mrb[0].mxu0 %v2369
        %v2371 = vpop.f32.mrb[0].mxu0
        %v2372 = vadd.f32 %v2279, %v2371
        %v2373 = vpop.f32.mrb[0].mxu0
        %2374 = vmatprep.mubr.f32.mxu0 0.0
        %v2375 = vand.u32 %v1673, 4294901760
        %2376 = vmatmul.mubr.f32.gmra.mrb[0].mxu0 %v2375
        %v2377 = vpop.f32.mrb[0].mxu0
        %v2378 = vadd.f32 %v2285, %v2377
        %v2379 = vpop.f32.mrb[0].mxu0
        %2380 = vdwg.mxu0
        %v2381 = vmul.f32 %v2372, 0.01
        %v2382 = vmul.f32 %v2378, 0.01
        %v2383 = vmax.f32 %v2372, %v2381
        %v2384 = vmax.f32 %v2378, %v2382
        %v2385 = vld [vmem:[%s7] sm:$0xff]
        %v2386 = vld [vmem:[%s7 + $0x8] sm:$0xff]
        %v2387 = vld [vmem:[%s7 + $0x10] sm:$0xff]
        %v2388 = vld [vmem:[%s7 + $0x18] sm:$0xff]
        %v2389 = vld [vmem:[%s8] sm:$0x1]
        %v2391 = vlaneseq
        %v2392 = vshrl.u32 %v2391, 7
        %v2393 = vsub.s32 0, %v2392
        %v2394 = vrot.slane %v2389, %v2393
        %vm2396 = vcmask 261120
        %v2398 = vsel %vm2396, %v2383, 0
        %v2401 = vsel %vm2396, %v2384, 0
        %2403 = vmatprep.subr.mxu0 0.0
        %v2404 = vand.u32 %v2385, 4294901760
        %2405 = vmatpush1.msra.mxu0 %v2404
        %2406 = vmatprep.subr.mxu0 0.0
        %v2407 = vand.u32 %v2386, 4294901760
        %2408 = vmatpush1.msra.mxu0 %v2407
        %2409 = vmatprep.subr.mxu0 0.0
        %v2410 = vand.u32 %v2387, 4294901760
        %2411 = vmatpush1.msra.mxu0 %v2410
        %2412 = vmatprep.subr.mxu0 0.0
        %v2413 = vand.u32 %v2388, 4294901760
        %2414 = vmatpush1.msra.mxu0 %v2413
        %2415 = vmatprep.subr.mxu0 0.0
        %2416 = vmatpush1.msra.mxu0 0.0
        %2417 = vmatprep.subr.mxu0 0.0
        %2418 = vmatpush1.msra.mxu0 0.0
        %2419 = vmatprep.subr.mxu0 0.0
        %2420 = vmatpush1.msra.mxu0 0.0
        %2421 = vmatprep.subr.mxu0 0.0
        %2422 = vmatpush1.msra.mxu0 0.0
        %2423 = vmatprep.subr.mxu0 0.0
        %2424 = vmatpush1.msra.mxu0 0.0
        %2425 = vmatprep.subr.mxu0 0.0
        %2426 = vmatpush1.msra.mxu0 0.0
        %2427 = vmatprep.subr.mxu0 0.0
        %2428 = vmatpush1.msra.mxu0 0.0
        %2429 = vmatprep.subr.mxu0 0.0
        %2430 = vmatpush1.msra.mxu0 0.0
        %2431 = vmatprep.subr.mxu0 0.0
        %2432 = vmatpush1.msra.mxu0 0.0
        %2433 = vmatprep.subr.mxu0 0.0
        %2434 = vmatpush1.msra.mxu0 0.0
        %2435 = vmatprep.subr.mxu0 0.0
        %2436 = vmatpush1.msra.mxu0 0.0
        %2437 = vmatprep.subr.mxu0 0.0
        %2438 = vmatpush1.msra.mxu0 0.0
        %2439 = vmatprep.subr.mxu0 0.0
        %2440 = vmatpush1.msra.mxu0 0.0
        %2441 = vmatprep.subr.mxu0 0.0
        %2442 = vmatpush1.msra.mxu0 0.0
        %2443 = vmatprep.subr.mxu0 0.0
        %2444 = vmatpush1.msra.mxu0 0.0
        %2445 = vmatprep.subr.mxu0 0.0
        %2446 = vmatpush1.msra.mxu0 0.0
        %2447 = vmatprep.subr.mxu0 0.0
        %2448 = vmatpush1.msra.mxu0 0.0
        %2449 = vmatprep.subr.mxu0 0.0
        %2450 = vmatpush1.msra.mxu0 0.0
        %2451 = vmatprep.subr.mxu0 0.0
        %2452 = vmatpush1.msra.mxu0 0.0
        %2453 = vmatprep.subr.mxu0 0.0
        %2454 = vmatpush1.msra.mxu0 0.0
        %2455 = vmatprep.subr.mxu0 0.0
        %2456 = vmatpush1.msra.mxu0 0.0
        %2457 = vmatprep.subr.mxu0 0.0
        %2458 = vmatpush1.msra.mxu0 0.0
        %2459 = vmatprep.subr.mxu0 0.0
        %2460 = vmatpush1.msra.mxu0 0.0
        %2461 = vmatprep.subr.mxu0 0.0
        %2462 = vmatpush1.msra.mxu0 0.0
        %2463 = vmatprep.subr.mxu0 0.0
        %2464 = vmatpush1.msra.mxu0 0.0
        %2465 = vmatprep.subr.mxu0 0.0
        %2466 = vmatpush1.msra.mxu0 0.0
        %2467 = vmatprep.subr.mxu0 0.0
        %2468 = vmatpush1.msra.mxu0 0.0
        %2469 = vmatprep.subr.mxu0 0.0
        %2470 = vmatpush1.msra.mxu0 0.0
        %2471 = vmatprep.mubr.f32.mxu0 0.0
        %v2472 = vand.u32 %v2398, 4294901760
        %v2473 = vsub.f32 %v2398, %v2472
        %v2474 = vand.u32 %v2473, 4294901760
        %v2475 = vsub.f32 %v2473, %v2474
        %v2476 = vand.u32 %v2475, 4294901760
        %2477 = vmatmul.mubr.f32.gmra.mrb[0].mxu0 %v2476
        %v2478 = vpop.f32.mrb[0].mxu0
        %v2479 = vadd.f32 %v2394, %v2478
        %v2480 = vpop.f32.mrb[0].mxu0
        %2481 = vmatprep.mubr.f32.mxu0 0.0
        %v2482 = vand.u32 %v2401, 4294901760
        %v2483 = vsub.f32 %v2401, %v2482
        %v2484 = vand.u32 %v2483, 4294901760
        %v2485 = vsub.f32 %v2483, %v2484
        %v2486 = vand.u32 %v2485, 4294901760
        %2487 = vmatmul.mubr.f32.gmra.mrb[0].mxu0 %v2486
        %v2488 = vpop.f32.mrb[0].mxu0
        %v2489 = vadd.f32 %v2394, %v2488
        %v2490 = vpop.f32.mrb[0].mxu0
        %2491 = vdwg.mxu0
        %2492 = vmatprep.subr.mxu0 0.0
        %v2493 = vand.u32 %v2385, 4294901760
        %v2494 = vsub.f32 %v2385, %v2493
        %v2495 = vand.u32 %v2494, 4294901760
        %v2496 = vsub.f32 %v2494, %v2495
        %v2497 = vand.u32 %v2496, 4294901760
        %2498 = vmatpush1.msra.mxu0 %v2497
        %2499 = vmatprep.subr.mxu0 0.0
        %v2500 = vand.u32 %v2386, 4294901760
        %v2501 = vsub.f32 %v2386, %v2500
        %v2502 = vand.u32 %v2501, 4294901760
        %v2503 = vsub.f32 %v2501, %v2502
        %v2504 = vand.u32 %v2503, 4294901760
        %2505 = vmatpush1.msra.mxu0 %v2504
        %2506 = vmatprep.subr.mxu0 0.0
        %v2507 = vand.u32 %v2387, 4294901760
        %v2508 = vsub.f32 %v2387, %v2507
        %v2509 = vand.u32 %v2508, 4294901760
        %v2510 = vsub.f32 %v2508, %v2509
        %v2511 = vand.u32 %v2510, 4294901760
        %2512 = vmatpush1.msra.mxu0 %v2511
        %2513 = vmatprep.subr.mxu0 0.0
        %v2514 = vand.u32 %v2388, 4294901760
        %v2515 = vsub.f32 %v2388, %v2514
        %v2516 = vand.u32 %v2515, 4294901760
        %v2517 = vsub.f32 %v2515, %v2516
        %v2518 = vand.u32 %v2517, 4294901760
        %2519 = vmatpush1.msra.mxu0 %v2518
        %2520 = vmatprep.subr.mxu0 0.0
        %2521 = vmatpush1.msra.mxu0 0.0
        %2522 = vmatprep.subr.mxu0 0.0
        %2523 = vmatpush1.msra.mxu0 0.0
        %2524 = vmatprep.subr.mxu0 0.0
        %2525 = vmatpush1.msra.mxu0 0.0
        %2526 = vmatprep.subr.mxu0 0.0
        %2527 = vmatpush1.msra.mxu0 0.0
        %2528 = vmatprep.subr.mxu0 0.0
        %2529 = vmatpush1.msra.mxu0 0.0
        %2530 = vmatprep.subr.mxu0 0.0
        %2531 = vmatpush1.msra.mxu0 0.0
        %2532 = vmatprep.subr.mxu0 0.0
        %2533 = vmatpush1.msra.mxu0 0.0
        %2534 = vmatprep.subr.mxu0 0.0
        %2535 = vmatpush1.msra.mxu0 0.0
        %2536 = vmatprep.subr.mxu0 0.0
        %2537 = vmatpush1.msra.mxu0 0.0
        %2538 = vmatprep.subr.mxu0 0.0
        %2539 = vmatpush1.msra.mxu0 0.0
        %2540 = vmatprep.subr.mxu0 0.0
        %2541 = vmatpush1.msra.mxu0 0.0
        %2542 = vmatprep.subr.mxu0 0.0
        %2543 = vmatpush1.msra.mxu0 0.0
        %2544 = vmatprep.subr.mxu0 0.0
        %2545 = vmatpush1.msra.mxu0 0.0
        %2546 = vmatprep.subr.mxu0 0.0
        %2547 = vmatpush1.msra.mxu0 0.0
        %2548 = vmatprep.subr.mxu0 0.0
        %2549 = vmatpush1.msra.mxu0 0.0
        %2550 = vmatprep.subr.mxu0 0.0
        %2551 = vmatpush1.msra.mxu0 0.0
        %2552 = vmatprep.subr.mxu0 0.0
        %2553 = vmatpush1.msra.mxu0 0.0
        %2554 = vmatprep.subr.mxu0 0.0
        %2555 = vmatpush1.msra.mxu0 0.0
        %2556 = vmatprep.subr.mxu0 0.0
        %2557 = vmatpush1.msra.mxu0 0.0
        %2558 = vmatprep.subr.mxu0 0.0
        %2559 = vmatpush1.msra.mxu0 0.0
        %2560 = vmatprep.subr.mxu0 0.0
        %2561 = vmatpush1.msra.mxu0 0.0
        %2562 = vmatprep.subr.mxu0 0.0
        %2563 = vmatpush1.msra.mxu0 0.0
        %2564 = vmatprep.subr.mxu0 0.0
        %2565 = vmatpush1.msra.mxu0 0.0
        %2566 = vmatprep.subr.mxu0 0.0
        %2567 = vmatpush1.msra.mxu0 0.0
        %2568 = vmatprep.subr.mxu0 0.0
        %2569 = vmatpush1.msra.mxu0 0.0
        %2570 = vmatprep.subr.mxu0 0.0
        %2571 = vmatpush1.msra.mxu0 0.0
        %2572 = vmatprep.subr.mxu0 0.0
        %2573 = vmatpush1.msra.mxu0 0.0
        %2574 = vmatprep.subr.mxu0 0.0
        %2575 = vmatpush1.msra.mxu0 0.0
        %2576 = vmatprep.mubr.f32.mxu0 0.0
        %v2577 = vand.u32 %v2398, 4294901760
        %2578 = vmatmul.mubr.f32.gmra.mrb[0].mxu0 %v2577
        %v2579 = vpop.f32.mrb[0].mxu0
        %v2580 = vadd.f32 %v2479, %v2579
        %v2581 = vpop.f32.mrb[0].mxu0
        %2582 = vmatprep.mubr.f32.mxu0 0.0
        %v2583 = vand.u32 %v2401, 4294901760
        %2584 = vmatmul.mubr.f32.gmra.mrb[0].mxu0 %v2583
        %v2585 = vpop.f32.mrb[0].mxu0
        %v2586 = vadd.f32 %v2489, %v2585
        %v2587 = vpop.f32.mrb[0].mxu0
        %2588 = vdwg.mxu0
        %2589 = vmatprep.subr.mxu0 0.0
        %v2590 = vand.u32 %v2385, 4294901760
        %v2591 = vsub.f32 %v2385, %v2590
        %2592 = vmatpush1.msra.mxu0 %v2591
        %2593 = vmatprep.subr.mxu0 0.0
        %v2594 = vand.u32 %v2386, 4294901760
        %v2595 = vsub.f32 %v2386, %v2594
        %2596 = vmatpush1.msra.mxu0 %v2595
        %2597 = vmatprep.subr.mxu0 0.0
        %v2598 = vand.u32 %v2387, 4294901760
        %v2599 = vsub.f32 %v2387, %v2598
        %2600 = vmatpush1.msra.mxu0 %v2599
        %2601 = vmatprep.subr.mxu0 0.0
        %v2602 = vand.u32 %v2388, 4294901760
        %v2603 = vsub.f32 %v2388, %v2602
        %2604 = vmatpush1.msra.mxu0 %v2603
        %2605 = vmatprep.subr.mxu0 0.0
        %2606 = vmatpush1.msra.mxu0 0.0
        %2607 = vmatprep.subr.mxu0 0.0
        %2608 = vmatpush1.msra.mxu0 0.0
        %2609 = vmatprep.subr.mxu0 0.0
        %2610 = vmatpush1.msra.mxu0 0.0
        %2611 = vmatprep.subr.mxu0 0.0
        %2612 = vmatpush1.msra.mxu0 0.0
        %2613 = vmatprep.subr.mxu0 0.0
        %2614 = vmatpush1.msra.mxu0 0.0
        %2615 = vmatprep.subr.mxu0 0.0
        %2616 = vmatpush1.msra.mxu0 0.0
        %2617 = vmatprep.subr.mxu0 0.0
        %2618 = vmatpush1.msra.mxu0 0.0
        %2619 = vmatprep.subr.mxu0 0.0
        %2620 = vmatpush1.msra.mxu0 0.0
        %2621 = vmatprep.subr.mxu0 0.0
        %2622 = vmatpush1.msra.mxu0 0.0
        %2623 = vmatprep.subr.mxu0 0.0
        %2624 = vmatpush1.msra.mxu0 0.0
        %2625 = vmatprep.subr.mxu0 0.0
        %2626 = vmatpush1.msra.mxu0 0.0
        %2627 = vmatprep.subr.mxu0 0.0
        %2628 = vmatpush1.msra.mxu0 0.0
        %2629 = vmatprep.subr.mxu0 0.0
        %2630 = vmatpush1.msra.mxu0 0.0
        %2631 = vmatprep.subr.mxu0 0.0
        %2632 = vmatpush1.msra.mxu0 0.0
        %2633 = vmatprep.subr.mxu0 0.0
        %2634 = vmatpush1.msra.mxu0 0.0
        %2635 = vmatprep.subr.mxu0 0.0
        %2636 = vmatpush1.msra.mxu0 0.0
        %2637 = vmatprep.subr.mxu0 0.0
        %2638 = vmatpush1.msra.mxu0 0.0
        %2639 = vmatprep.subr.mxu0 0.0
        %2640 = vmatpush1.msra.mxu0 0.0
        %2641 = vmatprep.subr.mxu0 0.0
        %2642 = vmatpush1.msra.mxu0 0.0
        %2643 = vmatprep.subr.mxu0 0.0
        %2644 = vmatpush1.msra.mxu0 0.0
        %2645 = vmatprep.subr.mxu0 0.0
        %2646 = vmatpush1.msra.mxu0 0.0
        %2647 = vmatprep.subr.mxu0 0.0
        %2648 = vmatpush1.msra.mxu0 0.0
        %2649 = vmatprep.subr.mxu0 0.0
        %2650 = vmatpush1.msra.mxu0 0.0
        %2651 = vmatprep.subr.mxu0 0.0
        %2652 = vmatpush1.msra.mxu0 0.0
        %2653 = vmatprep.subr.mxu0 0.0
        %2654 = vmatpush1.msra.mxu0 0.0
        %2655 = vmatprep.subr.mxu0 0.0
        %2656 = vmatpush1.msra.mxu0 0.0
        %2657 = vmatprep.subr.mxu0 0.0
        %2658 = vmatpush1.msra.mxu0 0.0
        %2659 = vmatprep.subr.mxu0 0.0
        %2660 = vmatpush1.msra.mxu0 0.0
        %2661 = vmatprep.mubr.f32.mxu0 0.0
        %v2662 = vand.u32 %v2398, 4294901760
        %v2663 = vsub.f32 %v2398, %v2662
        %2664 = vmatmul.mubr.f32.gmra.mrb[0].mxu0 %v2663
        %v2665 = vpop.f32.mrb[0].mxu0
        %v2666 = vadd.f32 %v2580, %v2665
        %v2667 = vpop.f32.mrb[0].mxu0
        %2668 = vmatprep.mubr.f32.mxu0 0.0
        %v2669 = vand.u32 %v2401, 4294901760
        %v2670 = vsub.f32 %v2401, %v2669
        %2671 = vmatmul.mubr.f32.gmra.mrb[0].mxu0 %v2670
        %v2672 = vpop.f32.mrb[0].mxu0
        %v2673 = vadd.f32 %v2586, %v2672
        %v2674 = vpop.f32.mrb[0].mxu0
        %2675 = vdwg.mxu0
        %2676 = vmatprep.subr.mxu0 0.0
        %v2677 = vand.u32 %v2385, 4294901760
        %2678 = vmatpush1.msra.mxu0 %v2677
        %2679 = vmatprep.subr.mxu0 0.0
        %v2680 = vand.u32 %v2386, 4294901760
        %2681 = vmatpush1.msra.mxu0 %v2680
        %2682 = vmatprep.subr.mxu0 0.0
        %v2683 = vand.u32 %v2387, 4294901760
        %2684 = vmatpush1.msra.mxu0 %v2683
        %2685 = vmatprep.subr.mxu0 0.0
        %v2686 = vand.u32 %v2388, 4294901760
        %2687 = vmatpush1.msra.mxu0 %v2686
        %2688 = vmatprep.subr.mxu0 0.0
        %2689 = vmatpush1.msra.mxu0 0.0
        %2690 = vmatprep.subr.mxu0 0.0
        %2691 = vmatpush1.msra.mxu0 0.0
        %2692 = vmatprep.subr.mxu0 0.0
        %2693 = vmatpush1.msra.mxu0 0.0
        %2694 = vmatprep.subr.mxu0 0.0
        %2695 = vmatpush1.msra.mxu0 0.0
        %2696 = vmatprep.subr.mxu0 0.0
        %2697 = vmatpush1.msra.mxu0 0.0
        %2698 = vmatprep.subr.mxu0 0.0
        %2699 = vmatpush1.msra.mxu0 0.0
        %2700 = vmatprep.subr.mxu0 0.0
        %2701 = vmatpush1.msra.mxu0 0.0
        %2702 = vmatprep.subr.mxu0 0.0
        %2703 = vmatpush1.msra.mxu0 0.0
        %2704 = vmatprep.subr.mxu0 0.0
        %2705 = vmatpush1.msra.mxu0 0.0
        %2706 = vmatprep.subr.mxu0 0.0
        %2707 = vmatpush1.msra.mxu0 0.0
        %2708 = vmatprep.subr.mxu0 0.0
        %2709 = vmatpush1.msra.mxu0 0.0
        %2710 = vmatprep.subr.mxu0 0.0
        %2711 = vmatpush1.msra.mxu0 0.0
        %2712 = vmatprep.subr.mxu0 0.0
        %2713 = vmatpush1.msra.mxu0 0.0
        %2714 = vmatprep.subr.mxu0 0.0
        %2715 = vmatpush1.msra.mxu0 0.0
        %2716 = vmatprep.subr.mxu0 0.0
        %2717 = vmatpush1.msra.mxu0 0.0
        %2718 = vmatprep.subr.mxu0 0.0
        %2719 = vmatpush1.msra.mxu0 0.0
        %2720 = vmatprep.subr.mxu0 0.0
        %2721 = vmatpush1.msra.mxu0 0.0
        %2722 = vmatprep.subr.mxu0 0.0
        %2723 = vmatpush1.msra.mxu0 0.0
        %2724 = vmatprep.subr.mxu0 0.0
        %2725 = vmatpush1.msra.mxu0 0.0
        %2726 = vmatprep.subr.mxu0 0.0
        %2727 = vmatpush1.msra.mxu0 0.0
        %2728 = vmatprep.subr.mxu0 0.0
        %2729 = vmatpush1.msra.mxu0 0.0
        %2730 = vmatprep.subr.mxu0 0.0
        %2731 = vmatpush1.msra.mxu0 0.0
        %2732 = vmatprep.subr.mxu0 0.0
        %2733 = vmatpush1.msra.mxu0 0.0
        %2734 = vmatprep.subr.mxu0 0.0
        %2735 = vmatpush1.msra.mxu0 0.0
        %2736 = vmatprep.subr.mxu0 0.0
        %2737 = vmatpush1.msra.mxu0 0.0
        %2738 = vmatprep.subr.mxu0 0.0
        %2739 = vmatpush1.msra.mxu0 0.0
        %2740 = vmatprep.subr.mxu0 0.0
        %2741 = vmatpush1.msra.mxu0 0.0
        %2742 = vmatprep.subr.mxu0 0.0
        %2743 = vmatpush1.msra.mxu0 0.0
        %2744 = vmatprep.mubr.f32.mxu0 0.0
        %v2745 = vand.u32 %v2398, 4294901760
        %v2746 = vsub.f32 %v2398, %v2745
        %v2747 = vand.u32 %v2746, 4294901760
        %2748 = vmatmul.mubr.f32.gmra.mrb[0].mxu0 %v2747
        %v2749 = vpop.f32.mrb[0].mxu0
        %v2750 = vadd.f32 %v2666, %v2749
        %v2751 = vpop.f32.mrb[0].mxu0
        %2752 = vmatprep.mubr.f32.mxu0 0.0
        %v2753 = vand.u32 %v2401, 4294901760
        %v2754 = vsub.f32 %v2401, %v2753
        %v2755 = vand.u32 %v2754, 4294901760
        %2756 = vmatmul.mubr.f32.gmra.mrb[0].mxu0 %v2755
        %v2757 = vpop.f32.mrb[0].mxu0
        %v2758 = vadd.f32 %v2673, %v2757
        %v2759 = vpop.f32.mrb[0].mxu0
        %2760 = vdwg.mxu0
        %2761 = vmatprep.subr.mxu0 0.0
        %v2762 = vand.u32 %v2385, 4294901760
        %v2763 = vsub.f32 %v2385, %v2762
        %v2764 = vand.u32 %v2763, 4294901760
        %2765 = vmatpush1.msra.mxu0 %v2764
        %2766 = vmatprep.subr.mxu0 0.0
        %v2767 = vand.u32 %v2386, 4294901760
        %v2768 = vsub.f32 %v2386, %v2767
        %v2769 = vand.u32 %v2768, 4294901760
        %2770 = vmatpush1.msra.mxu0 %v2769
        %2771 = vmatprep.subr.mxu0 0.0
        %v2772 = vand.u32 %v2387, 4294901760
        %v2773 = vsub.f32 %v2387, %v2772
        %v2774 = vand.u32 %v2773, 4294901760
        %2775 = vmatpush1.msra.mxu0 %v2774
        %2776 = vmatprep.subr.mxu0 0.0
        %v2777 = vand.u32 %v2388, 4294901760
        %v2778 = vsub.f32 %v2388, %v2777
        %v2779 = vand.u32 %v2778, 4294901760
        %2780 = vmatpush1.msra.mxu0 %v2779
        %2781 = vmatprep.subr.mxu0 0.0
        %2782 = vmatpush1.msra.mxu0 0.0
        %2783 = vmatprep.subr.mxu0 0.0
        %2784 = vmatpush1.msra.mxu0 0.0
        %2785 = vmatprep.subr.mxu0 0.0
        %2786 = vmatpush1.msra.mxu0 0.0
        %2787 = vmatprep.subr.mxu0 0.0
        %2788 = vmatpush1.msra.mxu0 0.0
        %2789 = vmatprep.subr.mxu0 0.0
        %2790 = vmatpush1.msra.mxu0 0.0
        %2791 = vmatprep.subr.mxu0 0.0
        %2792 = vmatpush1.msra.mxu0 0.0
        %2793 = vmatprep.subr.mxu0 0.0
        %2794 = vmatpush1.msra.mxu0 0.0
        %2795 = vmatprep.subr.mxu0 0.0
        %2796 = vmatpush1.msra.mxu0 0.0
        %2797 = vmatprep.subr.mxu0 0.0
        %2798 = vmatpush1.msra.mxu0 0.0
        %2799 = vmatprep.subr.mxu0 0.0
        %2800 = vmatpush1.msra.mxu0 0.0
        %2801 = vmatprep.subr.mxu0 0.0
        %2802 = vmatpush1.msra.mxu0 0.0
        %2803 = vmatprep.subr.mxu0 0.0
        %2804 = vmatpush1.msra.mxu0 0.0
        %2805 = vmatprep.subr.mxu0 0.0
        %2806 = vmatpush1.msra.mxu0 0.0
        %2807 = vmatprep.subr.mxu0 0.0
        %2808 = vmatpush1.msra.mxu0 0.0
        %2809 = vmatprep.subr.mxu0 0.0
        %2810 = vmatpush1.msra.mxu0 0.0
        %2811 = vmatprep.subr.mxu0 0.0
        %2812 = vmatpush1.msra.mxu0 0.0
        %2813 = vmatprep.subr.mxu0 0.0
        %2814 = vmatpush1.msra.mxu0 0.0
        %2815 = vmatprep.subr.mxu0 0.0
        %2816 = vmatpush1.msra.mxu0 0.0
        %2817 = vmatprep.subr.mxu0 0.0
        %2818 = vmatpush1.msra.mxu0 0.0
        %2819 = vmatprep.subr.mxu0 0.0
        %2820 = vmatpush1.msra.mxu0 0.0
        %2821 = vmatprep.subr.mxu0 0.0
        %2822 = vmatpush1.msra.mxu0 0.0
        %2823 = vmatprep.subr.mxu0 0.0
        %2824 = vmatpush1.msra.mxu0 0.0
        %2825 = vmatprep.subr.mxu0 0.0
        %2826 = vmatpush1.msra.mxu0 0.0
        %2827 = vmatprep.subr.mxu0 0.0
        %2828 = vmatpush1.msra.mxu0 0.0
        %2829 = vmatprep.subr.mxu0 0.0
        %2830 = vmatpush1.msra.mxu0 0.0
        %2831 = vmatprep.subr.mxu0 0.0
        %2832 = vmatpush1.msra.mxu0 0.0
        %2833 = vmatprep.subr.mxu0 0.0
        %2834 = vmatpush1.msra.mxu0 0.0
        %2835 = vmatprep.subr.mxu0 0.0
        %2836 = vmatpush1.msra.mxu0 0.0
        %2837 = vmatprep.mubr.f32.mxu0 0.0
        %v2838 = vand.u32 %v2398, 4294901760
        %2839 = vmatmul.mubr.f32.gmra.mrb[0].mxu0 %v2838
        %v2840 = vpop.f32.mrb[0].mxu0
        %v2841 = vadd.f32 %v2750, %v2840
        %v2842 = vpop.f32.mrb[0].mxu0
        %2843 = vmatprep.mubr.f32.mxu0 0.0
        %v2844 = vand.u32 %v2401, 4294901760
        %2845 = vmatmul.mubr.f32.gmra.mrb[0].mxu0 %v2844
        %v2846 = vpop.f32.mrb[0].mxu0
        %v2847 = vadd.f32 %v2758, %v2846
        %v2848 = vpop.f32.mrb[0].mxu0
        %2849 = vdwg.mxu0
        %2850 = vmatprep.subr.mxu0 0.0
        %v2851 = vand.u32 %v2385, 4294901760
        %2852 = vmatpush1.msra.mxu0 %v2851
        %2853 = vmatprep.subr.mxu0 0.0
        %v2854 = vand.u32 %v2386, 4294901760
        %2855 = vmatpush1.msra.mxu0 %v2854
        %2856 = vmatprep.subr.mxu0 0.0
        %v2857 = vand.u32 %v2387, 4294901760
        %2858 = vmatpush1.msra.mxu0 %v2857
        %2859 = vmatprep.subr.mxu0 0.0
        %v2860 = vand.u32 %v2388, 4294901760
        %2861 = vmatpush1.msra.mxu0 %v2860
        %2862 = vmatprep.subr.mxu0 0.0
        %2863 = vmatpush1.msra.mxu0 0.0
        %2864 = vmatprep.subr.mxu0 0.0
        %2865 = vmatpush1.msra.mxu0 0.0
        %2866 = vmatprep.subr.mxu0 0.0
        %2867 = vmatpush1.msra.mxu0 0.0
        %2868 = vmatprep.subr.mxu0 0.0
        %2869 = vmatpush1.msra.mxu0 0.0
        %2870 = vmatprep.subr.mxu0 0.0
        %2871 = vmatpush1.msra.mxu0 0.0
        %2872 = vmatprep.subr.mxu0 0.0
        %2873 = vmatpush1.msra.mxu0 0.0
        %2874 = vmatprep.subr.mxu0 0.0
        %2875 = vmatpush1.msra.mxu0 0.0
        %2876 = vmatprep.subr.mxu0 0.0
        %2877 = vmatpush1.msra.mxu0 0.0
        %2878 = vmatprep.subr.mxu0 0.0
        %2879 = vmatpush1.msra.mxu0 0.0
        %2880 = vmatprep.subr.mxu0 0.0
        %2881 = vmatpush1.msra.mxu0 0.0
        %2882 = vmatprep.subr.mxu0 0.0
        %2883 = vmatpush1.msra.mxu0 0.0
        %2884 = vmatprep.subr.mxu0 0.0
        %2885 = vmatpush1.msra.mxu0 0.0
        %2886 = vmatprep.subr.mxu0 0.0
        %2887 = vmatpush1.msra.mxu0 0.0
        %2888 = vmatprep.subr.mxu0 0.0
        %2889 = vmatpush1.msra.mxu0 0.0
        %2890 = vmatprep.subr.mxu0 0.0
        %2891 = vmatpush1.msra.mxu0 0.0
        %2892 = vmatprep.subr.mxu0 0.0
        %2893 = vmatpush1.msra.mxu0 0.0
        %2894 = vmatprep.subr.mxu0 0.0
        %2895 = vmatpush1.msra.mxu0 0.0
        %2896 = vmatprep.subr.mxu0 0.0
        %2897 = vmatpush1.msra.mxu0 0.0
        %2898 = vmatprep.subr.mxu0 0.0
        %2899 = vmatpush1.msra.mxu0 0.0
        %2900 = vmatprep.subr.mxu0 0.0
        %2901 = vmatpush1.msra.mxu0 0.0
        %2902 = vmatprep.subr.mxu0 0.0
        %2903 = vmatpush1.msra.mxu0 0.0
        %2904 = vmatprep.subr.mxu0 0.0
        %2905 = vmatpush1.msra.mxu0 0.0
        %2906 = vmatprep.subr.mxu0 0.0
        %2907 = vmatpush1.msra.mxu0 0.0
        %2908 = vmatprep.subr.mxu0 0.0
        %2909 = vmatpush1.msra.mxu0 0.0
        %2910 = vmatprep.subr.mxu0 0.0
        %2911 = vmatpush1.msra.mxu0 0.0
        %2912 = vmatprep.subr.mxu0 0.0
        %2913 = vmatpush1.msra.mxu0 0.0
        %2914 = vmatprep.subr.mxu0 0.0
        %2915 = vmatpush1.msra.mxu0 0.0
        %2916 = vmatprep.subr.mxu0 0.0
        %2917 = vmatpush1.msra.mxu0 0.0
        %2918 = vmatprep.mubr.f32.mxu0 0.0
        %v2919 = vand.u32 %v2398, 4294901760
        %2920 = vmatmul.mubr.f32.gmra.mrb[0].mxu0 %v2919
        %v2921 = vpop.f32.mrb[0].mxu0
        %v2922 = vadd.f32 %v2841, %v2921
        %v2923 = vpop.f32.mrb[0].mxu0
        %2924 = vmatprep.mubr.f32.mxu0 0.0
        %v2925 = vand.u32 %v2401, 4294901760
        %2926 = vmatmul.mubr.f32.gmra.mrb[0].mxu0 %v2925
        %v2927 = vpop.f32.mrb[0].mxu0
        %v2928 = vadd.f32 %v2847, %v2927
        %v2929 = vpop.f32.mrb[0].mxu0
        %2930 = vdwg.mxu0
        %vm2931 = vcmask 64512
        %2932 = vst.msk [vmem:[%s353] sm:$0xff] %vm2931, %v2922
        %2933 = vst.msk [vmem:[%s353 + $0x8] sm:$0xff] %vm2931, %v2928
        %s2934 = smul.u32 2, %s23
        %p2935 = scmp.lt.s32.totalorder %s2934, 3
        %s2936 = scalar_select %p2935, %s2934, 3
        %s2937 = smul.addr %s2936, 8
        %s2938 = scalar_lea.vmem %s9, %s2937
        // Predicated region
        $region61: #{tpu_custom_call.1} parent=55 // pred_check
          %p2939 = pneg %p235
        $region62: #{tpu_custom_call.1} parent=55 // pred_check_branch
          %2941 = sbr.rel (%p2939) target = $region64
        $region63: #{tpu_custom_call.1} parent=55 // pred_region
          %s2942 = smul.u32 2, %s23
        $region64: #{tpu_custom_call.1} parent=55 // pred_fallthru
          _
      $region56: #{tpu_custom_call.1} parent=5 // pred_fallthru
        _
      %p2943 = scmp.le.s32.totalorder 2, %s18
      // Predicated region
      $region65: #{tpu_custom_call.1} parent=5 // pred_check
        %p2944 = pneg %p2943
      $region66: #{tpu_custom_call.1} parent=5 // pred_check_branch
        %2946 = sbr.rel (%p2944) target = $region68
      $region67: #{tpu_custom_call.1} parent=5 // pred_region
        %s2947 = ssub.s32 %s18, 2
        // Predicated region
        $region69: #{tpu_custom_call.1} parent=67 // pred_check
          %p2948 = pneg %p241
        $region70: #{tpu_custom_call.1} parent=67 // pred_check_branch
          %2950 = sbr.rel (%p2948) target = $region72
        $region71: #{tpu_custom_call.1} parent=67 // pred_region
          %s2951 = smul.u32 2, %s24
          %p2952 = scmp.lt.s32.totalorder %s2951, 3
          %s2953 = scalar_select %p2952, %s2951, 3
          %s2954 = smul.addr %s2953, 8
          %s2955 = scalar_lea.vmem %s9, %s2954
        $region72: #{tpu_custom_call.1} parent=67 // pred_fallthru
          _
      $region68: #{tpu_custom_call.1} parent=5 // pred_fallthru
        _
    $region6: #{tpu_custom_call.1} parent=1 // loop_footer
      %s22 = sadd.s32 1, %s18
    $region7: #{tpu_custom_call.1} parent=1 // loop_footer_branch
      %17 = sbr.rel target = $region3
    $region8: #{tpu_custom_call.1} parent=1 // loop_exit
      _
    %2956 = vsyncpa [#allocation3], 1
    %s2957 = scalar_lea.sflag [#allocation3], 1
    %2958 = vsyncpa %s2957, 1

</llo_original>
